<compile_context>
chip_gen: v6e
topology: v6e:2x2x1
jax: 0.10.0
libtpu: 0.0.40
codegen_flags: <defaults>
</compile_context>

<pallas_src>
import functools

import jax
import jax.numpy as jnp
from jax import lax
from jax.experimental import pallas as pl
from jax.experimental.pallas import tpu as pltpu

BN_EPS = 1e-5


# ----------------------------- TPU-generation knobs -------------------------
@functools.lru_cache(maxsize=None)
def _tpu_vmem_bytes():
    try:
        cap = int(pltpu.get_tpu_info().vmem_capacity_bytes)
        if cap > 0:
            return cap
    except Exception:
        pass
    return 64 * 1024 * 1024  # conservative (v7x per-TC VMEM)


@functools.lru_cache(maxsize=None)
def _vmem_limit_bytes():
    cap = _tpu_vmem_bytes()
    return max(32 * 1024 * 1024, min(cap - 8 * 1024 * 1024, 100 * 1024 * 1024))


def _compiler_params(semantics):
    return pltpu.CompilerParams(dimension_semantics=semantics,
                                vmem_limit_bytes=_vmem_limit_bytes())


def _pick_tile(dim, pref=None):
    if pref is None:
        # v7x (64 MiB VMEM): tile 512 keeps >=2 grid steps per TC after the
        # megacore split; v5e/v6e (128 MiB): tile 1024 (fewer, bigger DMAs).
        pref = 512 if _tpu_vmem_bytes() <= 64 * 1024 * 1024 else 1024
    # TODO(synk): pad feature dims that are not multiples of 128 instead of asserting.
    assert dim % 128 == 0, f"dim {dim}: feature dims must be multiples of 128"
    t = min(pref, dim)
    t = (t // 128) * 128
    while dim % t != 0:
        t -= 128
    return t


def _view_inputs_and_specs(x, batch, kdim):
    """Two per-view resident (B, K) blocks; single-buffered (index never changes)."""
    pm = pl.Buffered(1)
    if isinstance(x, tuple):                      # first layer: y1, y2 separate
        x1, x2 = x
        specs = [pl.BlockSpec((batch, kdim), lambda j: (0, 0), pipeline_mode=pm),
                 pl.BlockSpec((batch, kdim), lambda j: (0, 0), pipeline_mode=pm)]
        return (x1, x2), specs
    # later layers: rows [0,B) and [B,2B) of the same (2B, K) activation
    specs = [pl.BlockSpec((batch, kdim), lambda j: (0, 0), pipeline_mode=pm),
             pl.BlockSpec((batch, kdim), lambda j: (1, 0), pipeline_mode=pm)]
    return (x, x), specs


# ----------------------------- projector kernels ----------------------------
def _linear_bn_relu_kernel(x1_ref, x2_ref, w_ref, g_ref, b_ref, o_ref, *, eps):
    """One output-column tile of Linear -> per-view BatchNorm(train) -> ReLU."""
    w = w_ref[...]
    g = g_ref[...]
    b = b_ref[...]
    half = x1_ref.shape[0]

    def _one_view(x_ref, row0):
        h = jnp.dot(x_ref[...], w, preferred_element_type=jnp.float32)
        mean = jnp.mean(h, axis=0, keepdims=True)
        cent = h - mean
        var = jnp.mean(cent * cent, axis=0, keepdims=True)    # centered, stable
        out = jnp.maximum(cent * lax.rsqrt(var + eps) * g + b, 0.0)
        o_ref[row0:row0 + half, :] = out.astype(o_ref.dtype)  # no concat temp

    _one_view(x1_ref, 0)
    _one_view(x2_ref, half)


def _final_linear_bn_kernel(x1_ref, x2_ref, w_ref, z_ref, *, eps):
    """Final Linear column tile with the affine-free BatchNorm folded in."""
    w = w_ref[...]
    half = x1_ref.shape[0]

    def _one_view(x_ref, row0):
        h = jnp.dot(x_ref[...], w, preferred_element_type=jnp.float32)
        mean = jnp.mean(h, axis=0, keepdims=True)
        cent = h - mean
        var = jnp.mean(cent * cent, axis=0, keepdims=True)
        z_ref[row0:row0 + half, :] = (cent * lax.rsqrt(var + eps)).astype(z_ref.dtype)

    _one_view(x1_ref, 0)
    _one_view(x2_ref, half)


def fused_linear_bn_relu(x, w, gamma, beta, batch, *, tile_n=None):
    kdim, n = w.shape
    tn = _pick_tile(n, tile_n)
    (x1, x2), view_specs = _view_inputs_and_specs(x, batch, kdim)
    return pl.pallas_call(
        functools.partial(_linear_bn_relu_kernel, eps=BN_EPS),
        out_shape=jax.ShapeDtypeStruct((2 * batch, n), jnp.bfloat16),
        grid=(n // tn,),
        in_specs=view_specs + [
            pl.BlockSpec((kdim, tn), lambda j: (0, j)),   # stream weight columns
            pl.BlockSpec((1, tn), lambda j: (0, j)),      # gamma
            pl.BlockSpec((1, tn), lambda j: (0, j)),      # beta
        ],
        out_specs=pl.BlockSpec((2 * batch, tn), lambda j: (0, j)),
        compiler_params=_compiler_params(("parallel",)),
    )(x1, x2, w, gamma, beta)


def fused_final_linear_bn(x, w, batch, *, tile_n=None):
    kdim, n = w.shape
    tn = _pick_tile(n, tile_n)
    (x1, x2), view_specs = _view_inputs_and_specs(x, batch, kdim)
    return pl.pallas_call(
        functools.partial(_final_linear_bn_kernel, eps=BN_EPS),
        out_shape=jax.ShapeDtypeStruct((2 * batch, n), jnp.bfloat16),
        grid=(n // tn,),
        in_specs=view_specs + [pl.BlockSpec((kdim, tn), lambda j: (0, j))],
        out_specs=pl.BlockSpec((2 * batch, tn), lambda j: (0, j)),
        compiler_params=_compiler_params(("parallel",)),
    )(x1, x2, w)


# ------------------------------- loss kernel --------------------------------
def _bt_loss_kernel(z1_ref, z2_ref, part_ref, *, inv_batch, tile):
    j = pl.program_id(0)

    # (H, tile) chunk of c = bn(z1).T @ bn(z2) / B.  Contract the batch dim of
    # both operands directly (transposed-LHS matmul, no explicit relayout).
    # TODO(synk): if lowering ever inserts a per-step XLU transpose of z1 here,
    #             emit z in (H, 2B) layout from the final-linear kernel instead.
    c_blk = lax.dot_general(
        z1_ref[...], z2_ref[...],
        dimension_numbers=(((0,), (0,)), ((), ())),
        preferred_element_type=jnp.float32) * inv_batch

    # Row 0: per-column sum(c^2) for this tile.
    part_ref[0:1, :] = jnp.sum(c_blk * c_blk, axis=0, keepdims=True)

    # Row 1: diagonal entries of c restricted to this column tile.  Computed
    # directly from the resident z columns (B*tile MACs) instead of masking
    # the full (H, tile) chunk.
    col0 = pl.multiple_of(j * tile, tile)
    z1_cols = z1_ref[:, pl.ds(col0, tile)].astype(jnp.float32)
    z2_cols = z2_ref[...].astype(jnp.float32)
    part_ref[1:2, :] = (jnp.sum(z1_cols * z2_cols, axis=0, keepdims=True)
                        * inv_batch)


def barlow_twins_loss(z, batch, lambd, scale_loss, *, tile_n=None):
    two_b, hdim = z.shape
    assert two_b == 2 * batch
    tn = _pick_tile(hdim, tile_n)
    kernel = functools.partial(_bt_loss_kernel,
                               inv_batch=1.0 / float(batch), tile=tn)
    partials = pl.pallas_call(
        kernel,
        out_shape=jax.ShapeDtypeStruct((2, hdim), jnp.float32),
        grid=(hdim // tn,),
        in_specs=[
            pl.BlockSpec((batch, hdim), lambda j: (0, 0),
                         pipeline_mode=pl.Buffered(1)),     # z1 resident, 1 buf
            pl.BlockSpec((batch, tn), lambda j: (1, j)),     # stream z2 columns
        ],
        out_specs=pl.BlockSpec((2, tn), lambda j: (0, j)),
        # Per-tile independent partial outputs -> megacore-parallel axis.
        compiler_params=_compiler_params(("parallel",)),
    )(z, z)
    # Tiny final reduction in plain XLA (2*H f32).
    sq_sum = jnp.sum(partials[0])
    dg_sum = jnp.sum(partials[1])
    # on_diag + off_diag == sum(c^2) - 2*sum(diag(c)) + H
    total = sq_sum - 2.0 * dg_sum + float(hdim)
    return (float(lambd) * float(scale_loss)) * total


# ------------------------------- top level ----------------------------------
def projection_forward(y1, y2, params, lambd=5e-5, scale_loss=1.0 / 32.0,
                       *, tile_n=None):
    batch = y1.shape[0]
    assert y2.shape == y1.shape
    assert batch % 8 == 0, "batch must be a multiple of 8 (sublane tiling)"
    # Weights are expected pre-cast to bf16 (cast once at parameter creation,
    # not per forward).  Only the small (B, in_dim) inputs are cast here.
    y1b = y1.astype(jnp.bfloat16)
    y2b = y2.astype(jnp.bfloat16)
    h = fused_linear_bn_relu((y1b, y2b), params["w1"], params["g1"], params["b1"],
                             batch, tile_n=tile_n)
    h = fused_linear_bn_relu(h, params["w2"], params["g2"], params["b2"],
                             batch, tile_n=tile_n)
    z = fused_final_linear_bn(h, params["w3"], batch, tile_n=tile_n)
    return barlow_twins_loss(z, batch, lambd, scale_loss, tile_n=tile_n)


# ---------------------------- pure-JAX reference ----------------------------
def _ref_bn(x, gamma, beta):
    mu = jnp.mean(x, axis=0, keepdims=True)
    var = jnp.mean((x - mu) ** 2, axis=0, keepdims=True)
    return (x - mu) * lax.rsqrt(var + BN_EPS) * gamma + beta


def _ref_projector(y, p):
    w1 = p["w1"].astype(jnp.float32)
    w2 = p["w2"].astype(jnp.float32)
    w3 = p["w3"].astype(jnp.float32)
    h = jnp.maximum(_ref_bn(y @ w1, p["g1"], p["b1"]), 0.0)
    h = jnp.maximum(_ref_bn(h @ w2, p["g2"], p["b2"]), 0.0)
    return h @ w3


def _ref_forward(y1, y2, p, lambd, scale_loss):
    z1 = _ref_projector(y1, p)
    z2 = _ref_projector(y2, p)
    batch, hdim = z1.shape
    one = jnp.ones((1, hdim), jnp.float32)
    zero = jnp.zeros((1, hdim), jnp.float32)
    c = (_ref_bn(z1, one, zero).T @ _ref_bn(z2, one, zero)) / batch
    diag = jnp.diagonal(c)
    on = jnp.sum((diag - 1.0) ** 2) * scale_loss
    off = (jnp.sum(c ** 2) - jnp.sum(diag ** 2)) * scale_loss
    return lambd * on + lambd * off


if __name__ == "__main__":
    # Small stand-in for the real module (in_dim=2048, H=2048): same structure,
    # shapes chosen to exercise multi-tile grids (512 / 256 = 2 column tiles).
    B, IN_DIM, H = 64, 512, 512
    LAMBD, SCALE_LOSS = 5e-5, 1.0 / 32.0

    key = jax.random.PRNGKey(0)
    k1, k2, kw1, kw2, kw3 = jax.random.split(key, 5)
    y1 = jax.random.normal(k1, (B, IN_DIM), jnp.float32)
    y2 = jax.random.normal(k2, (B, IN_DIM), jnp.float32)

    # Weights stored as (in_features, out_features) so x @ W == PyTorch x @ W.T,
    # pre-cast to bf16 once (no per-forward weight casts / HBM re-reads).
    params = {
        "w1": (jax.random.normal(kw1, (IN_DIM, H), jnp.float32)
               * (IN_DIM ** -0.5)).astype(jnp.bfloat16),
        "g1": jnp.ones((1, H), jnp.float32),
        "b1": jnp.zeros((1, H), jnp.float32),
        "w2": (jax.random.normal(kw2, (H, H), jnp.float32)
               * (H ** -0.5)).astype(jnp.bfloat16),
        "g2": jnp.ones((1, H), jnp.float32),
        "b2": jnp.zeros((1, H), jnp.float32),
        "w3": (jax.random.normal(kw3, (H, H), jnp.float32)
               * (H ** -0.5)).astype(jnp.bfloat16),
    }

    loss = jax.block_until_ready(
        projection_forward(y1, y2, params, LAMBD, SCALE_LOSS, tile_n=256))
    ref = jax.block_until_ready(_ref_forward(y1, y2, params, LAMBD, SCALE_LOSS))
    assert jnp.allclose(loss, ref, rtol=3e-2, atol=1e-6), (loss, ref)
    print("KERNEL_OK")
</pallas_src>

<mosaic_0001>
module attributes {stable_mosaic.version = 11 : i64} {
  func.func @_linear_bn_relu_kernel(%arg0: i32, %arg1: memref<64x512xbf16, #tpu.memory_space<vmem>>, %arg2: memref<64x512xbf16, #tpu.memory_space<vmem>>, %arg3: memref<512x256xbf16, #tpu.memory_space<vmem>>, %arg4: memref<1x256xf32, #tpu.memory_space<vmem>>, %arg5: memref<1x256xf32, #tpu.memory_space<vmem>>, %arg6: memref<128x256xbf16, #tpu.memory_space<vmem>>) attributes {dimension_semantics = [#tpu.dimension_semantics<parallel>], iteration_bounds = array<i64: 2>, scalar_prefetch = 0 : i64, scratch_operands = 0 : i64, tpu.core_type = #tpu.core_type<tc>, window_params = [{pipeline_mode = #tpu.pipeline_mode<synchronous>, transform_indices = @transform_0, window_bounds = array<i64: 64, 512>}, {pipeline_mode = #tpu.pipeline_mode<synchronous>, transform_indices = @transform_1, window_bounds = array<i64: 64, 512>}, {transform_indices = @transform_2, window_bounds = array<i64: 512, 256>}, {transform_indices = @transform_3, window_bounds = array<i64: 1, 256>}, {transform_indices = @transform_4, window_bounds = array<i64: 1, 256>}, {transform_indices = @transform_5, window_bounds = array<i64: 128, 256>}]} {
    %c0 = arith.constant 0 : index
    %c0_0 = arith.constant 0 : index
    %0 = vector.load %arg3[%c0, %c0_0] : memref<512x256xbf16, #tpu.memory_space<vmem>>, vector<512x256xbf16>
    %c0_1 = arith.constant 0 : index
    %c0_2 = arith.constant 0 : index
    %1 = vector.load %arg4[%c0_1, %c0_2] : memref<1x256xf32, #tpu.memory_space<vmem>>, vector<1x256xf32>
    %c0_3 = arith.constant 0 : index
    %c0_4 = arith.constant 0 : index
    %2 = vector.load %arg5[%c0_3, %c0_4] : memref<1x256xf32, #tpu.memory_space<vmem>>, vector<1x256xf32>
    %c0_5 = arith.constant 0 : index
    %c0_6 = arith.constant 0 : index
    %3 = vector.load %arg1[%c0_5, %c0_6] : memref<64x512xbf16, #tpu.memory_space<vmem>>, vector<64x512xbf16>
    %cst = arith.constant dense<0.000000e+00> : vector<64x256xf32>
    %4 = tpu.matmul %3, %0, %cst {dimension_numbers = #tpu.dot_dimension_numbers<[1], [0], [0], [1], [0, 0, 1, 1], [], []>} : vector<64x512xbf16>, vector<512x256xbf16>, vector<64x256xf32> -> vector<64x256xf32>
    %cst_7 = arith.constant dense<0.000000e+00> : vector<256xf32>
    %5 = vector.multi_reduction <add>, %4, %cst_7 [0] : vector<64x256xf32> to vector<256xf32>
    %6 = vector.shape_cast %5 : vector<256xf32> to vector<1x256xf32>
    %cst_8 = arith.constant 6.400000e+01 : f32
    %7 = vector.broadcast %cst_8 : f32 to vector<1x256xf32>
    %8 = arith.divf %6, %7 : vector<1x256xf32>
    %9 = vector.broadcast %8 : vector<1x256xf32> to vector<64x256xf32>
    %10 = arith.subf %4, %9 : vector<64x256xf32>
    %11 = arith.mulf %10, %10 : vector<64x256xf32>
    %cst_9 = arith.constant dense<0.000000e+00> : vector<256xf32>
    %12 = vector.multi_reduction <add>, %11, %cst_9 [0] : vector<64x256xf32> to vector<256xf32>
    %13 = vector.shape_cast %12 : vector<256xf32> to vector<1x256xf32>
    %cst_10 = arith.constant 6.400000e+01 : f32
    %14 = vector.broadcast %cst_10 : f32 to vector<1x256xf32>
    %15 = arith.divf %13, %14 : vector<1x256xf32>
    %cst_11 = arith.constant 9.99999974E-6 : f32
    %16 = vector.broadcast %cst_11 : f32 to vector<1x256xf32>
    %17 = arith.addf %15, %16 : vector<1x256xf32>
    %18 = math.rsqrt %17 : vector<1x256xf32>
    %19 = vector.broadcast %18 : vector<1x256xf32> to vector<64x256xf32>
    %20 = arith.mulf %10, %19 : vector<64x256xf32>
    %21 = vector.broadcast %1 : vector<1x256xf32> to vector<64x256xf32>
    %22 = arith.mulf %20, %21 : vector<64x256xf32>
    %23 = vector.broadcast %2 : vector<1x256xf32> to vector<64x256xf32>
    %24 = arith.addf %22, %23 : vector<64x256xf32>
    %cst_12 = arith.constant 0.000000e+00 : f32
    %25 = vector.broadcast %cst_12 : f32 to vector<64x256xf32>
    %26 = arith.maximumf %24, %25 : vector<64x256xf32>
    %27 = arith.truncf %26 : vector<64x256xf32> to vector<64x256xbf16>
    %c0_13 = arith.constant 0 : index
    %c0_14 = arith.constant 0 : index
    %28 = vector.load %arg6[%c0_13, %c0_14] : memref<128x256xbf16, #tpu.memory_space<vmem>>, vector<64x256xbf16>
    tpu.vector_store %arg6[%c0_13, %c0_14], %27 {strides = array<i32>} : memref<128x256xbf16, #tpu.memory_space<vmem>>, vector<64x256xbf16>,
    %c0_15 = arith.constant 0 : index
    %c0_16 = arith.constant 0 : index
    %29 = vector.load %arg2[%c0_15, %c0_16] : memref<64x512xbf16, #tpu.memory_space<vmem>>, vector<64x512xbf16>
    %cst_17 = arith.constant dense<0.000000e+00> : vector<64x256xf32>
    %30 = tpu.matmul %29, %0, %cst_17 {dimension_numbers = #tpu.dot_dimension_numbers<[1], [0], [0], [1], [0, 0, 1, 1], [], []>} : vector<64x512xbf16>, vector<512x256xbf16>, vector<64x256xf32> -> vector<64x256xf32>
    %cst_18 = arith.constant dense<0.000000e+00> : vector<256xf32>
    %31 = vector.multi_reduction <add>, %30, %cst_18 [0] : vector<64x256xf32> to vector<256xf32>
    %32 = vector.shape_cast %31 : vector<256xf32> to vector<1x256xf32>
    %cst_19 = arith.constant 6.400000e+01 : f32
    %33 = vector.broadcast %cst_19 : f32 to vector<1x256xf32>
    %34 = arith.divf %32, %33 : vector<1x256xf32>
    %35 = vector.broadcast %34 : vector<1x256xf32> to vector<64x256xf32>
    %36 = arith.subf %30, %35 : vector<64x256xf32>
    %37 = arith.mulf %36, %36 : vector<64x256xf32>
    %cst_20 = arith.constant dense<0.000000e+00> : vector<256xf32>
    %38 = vector.multi_reduction <add>, %37, %cst_20 [0] : vector<64x256xf32> to vector<256xf32>
    %39 = vector.shape_cast %38 : vector<256xf32> to vector<1x256xf32>
    %cst_21 = arith.constant 6.400000e+01 : f32
    %40 = vector.broadcast %cst_21 : f32 to vector<1x256xf32>
    %41 = arith.divf %39, %40 : vector<1x256xf32>
    %cst_22 = arith.constant 9.99999974E-6 : f32
    %42 = vector.broadcast %cst_22 : f32 to vector<1x256xf32>
    %43 = arith.addf %41, %42 : vector<1x256xf32>
    %44 = math.rsqrt %43 : vector<1x256xf32>
    %45 = vector.broadcast %44 : vector<1x256xf32> to vector<64x256xf32>
    %46 = arith.mulf %36, %45 : vector<64x256xf32>
    %47 = vector.broadcast %1 : vector<1x256xf32> to vector<64x256xf32>
    %48 = arith.mulf %46, %47 : vector<64x256xf32>
    %49 = vector.broadcast %2 : vector<1x256xf32> to vector<64x256xf32>
    %50 = arith.addf %48, %49 : vector<64x256xf32>
    %cst_23 = arith.constant 0.000000e+00 : f32
    %51 = vector.broadcast %cst_23 : f32 to vector<64x256xf32>
    %52 = arith.maximumf %50, %51 : vector<64x256xf32>
    %53 = arith.truncf %52 : vector<64x256xf32> to vector<64x256xbf16>
    %c64 = arith.constant 64 : index
    %c0_24 = arith.constant 0 : index
    %54 = vector.load %arg6[%c64, %c0_24] : memref<128x256xbf16, #tpu.memory_space<vmem>>, vector<64x256xbf16>
    tpu.vector_store %arg6[%c64, %c0_24], %53 {strides = array<i32>} : memref<128x256xbf16, #tpu.memory_space<vmem>>, vector<64x256xbf16>,
    return
  }
  func.func @transform_0(%arg0: i32) -> (i32, i32) {
    %c0_i32 = arith.constant 0 : i32
    %c0_i32_0 = arith.constant 0 : i32
    %c0_i32_1 = arith.constant 0 : i32
    return %c0_i32, %c0_i32_0 : i32, i32
  }
  func.func @transform_1(%arg0: i32) -> (i32, i32) {
    %c0_i32 = arith.constant 0 : i32
    %c0_i32_0 = arith.constant 0 : i32
    %c0_i32_1 = arith.constant 0 : i32
    return %c0_i32, %c0_i32_0 : i32, i32
  }
  func.func @transform_2(%arg0: i32) -> (i32, i32) {
    %c0_i32 = arith.constant 0 : i32
    %c0_i32_0 = arith.constant 0 : i32
    return %c0_i32, %arg0 : i32, i32
  }
  func.func @transform_3(%arg0: i32) -> (i32, i32) {
    %c0_i32 = arith.constant 0 : i32
    %c0_i32_0 = arith.constant 0 : i32
    return %c0_i32, %arg0 : i32, i32
  }
  func.func @transform_4(%arg0: i32) -> (i32, i32) {
    %c0_i32 = arith.constant 0 : i32
    %c0_i32_0 = arith.constant 0 : i32
    return %c0_i32, %arg0 : i32, i32
  }
  func.func @transform_5(%arg0: i32) -> (i32, i32) {
    %c0_i32 = arith.constant 0 : i32
    %c0_i32_0 = arith.constant 0 : i32
    return %c0_i32, %arg0 : i32, i32
  }
}

</mosaic_0001>

<llo_original>
// kernel: tpu_custom_call.1
$region0: #{tpu_custom_call.1}
  #allocation0 [shape = 'u32[]', space=smem, size = 0x4, offset = 0x4, fixed_abs, tag = 'smem constant byte address 0x4 - core index']
  #allocation1 [shape = 'u32[144,128]{1,0:T(1,128)}', space=vmem, size = 0x12000, scoped, tag = 'internal scratch']
  %s0 = inlined_call_operand.hbm [shape: bf16[64,512], index: 0, kind: input, shape index: {}]
  %s1 = inlined_call_operand.hbm [shape: bf16[64,512], index: 1, kind: input, shape index: {}]
  %s2 = inlined_call_operand.hbm [shape: bf16[512,512], index: 2, kind: input, shape index: {}]
  %s3 = inlined_call_operand.vmem [shape: f32[1,512], index: 3, kind: input, shape index: {}]
  %s4 = inlined_call_operand.hbm [shape: f32[1,512], index: 4, kind: input, shape index: {}]
  %s5 = inlined_call_operand.hbm [shape: bf16[128,512], index: 5, kind: output, shape index: {}]
  %s6 = sld [smem:[#allocation0]]
  $region69: #{tpu_custom_call.1} parent=0
    _
  %s8 = ssub.s32 1, %s6
  %s9 = scalar_select 0, %s8, %s6
  $region1: #{tpu_custom_call.1} parent=0
    #allocation2 [shape = 'u8[65536]{0}', space=vmem, size = 0x10000, scoped, tag = 'input window, operand 0, single buffered']
    #allocation3 [shape = 's32[2]{0}', space=sflag, size = 0x8, scoped, tag = 'scoped memory for tpu_custom_call.1']
    #allocation4 [shape = 's32[2]{0}', space=sflag, size = 0x8, scoped, tag = 'scoped memory for tpu_custom_call.1']
    #allocation5 [shape = 'u8[65536]{0}', space=vmem, size = 0x10000, scoped, tag = 'input window, operand 1, single buffered']
    #allocation6 [shape = 's32[1]{0}', space=sflag, size = 0x4, scoped, tag = 'scoped memory for tpu_custom_call.1']
    #allocation7 [shape = 'u8[524288]{0}', space=vmem, size = 0x80000, scoped, tag = 'input window, operand 2']
    #allocation8 [shape = 'u8[2048]{0}', space=vmem, size = 0x800, scoped, tag = 'input window, operand 4']
    #allocation9 [shape = 'u8[131072]{0}', space=vmem, size = 0x20000, scoped, tag = 'output window, operand 0']
    %10 = vsyncpa [#allocation3], 0
    %11 = vsyncpa [#allocation6], 0
    %12 = vsyncpa [#allocation4], 0
    %s13 = scalar_lea.sflag [#allocation4], 1
    %14 = vsyncpa %s13, 0
    loop: start=0, step=1, limit=4
    $region2: #{tpu_custom_call.1} parent=1 // loop_pre_header
      _
    $region3: #{tpu_custom_call.1} parent=1 // loop_header
      %s16 = sphi 0, %s20
      %p17 = scmp.ge.s32.totalorder %s16, 4
      %s24 = sphi 0, %s24
      %s26 = sphi 0, %s24
      %s27 = sphi 0, %s26
      %s41 = sphi 0, %s27
      %s45 = sphi 0, %s45
      %s47 = sphi 0, %s45
      %s48 = sphi 0, %s47
      %s62 = sphi 0, %s48
      %s68 = sphi 0, %s70
      %s71 = sphi 0, %s68
      %s72 = sphi 0, %s71
      %s88 = sphi 0, %s72
      %s94 = sphi 0, %s96
      %s97 = sphi 0, %s94
      %s98 = sphi 0, %s97
      %s114 = sphi 0, %s98
      %s120 = sphi 0, %s122
      %s123 = sphi 0, %s120
      %s124 = sphi 0, %s123
      %s140 = sphi 0, %s124
      %s146 = sphi 0, %s148
      %s149 = sphi 0, %s146
      %s150 = sphi 0, %s149
      %s166 = sphi 0, %s150
    $region4: #{tpu_custom_call.1} parent=1 // loop_header_branch
      %19 = sbr.rel (%p17) target = $region8
    $region5: #{tpu_custom_call.1} parent=1 // loop_body
      %s21 = ssub.s32 %s16, 1
      %s22 = ssub.s32 %s16, 2
      %s23 = sadd.s32 %s16, 1
      %s25 = sadd.s32 %s24, 1
      %p28 = scmp.eq.s32.totalorder %s16, 1
      %p29 = scmp.ne.s32.totalorder %s24, %s26
      %p30 = scmp.eq.s32.totalorder %s16, 0
      %p31 = por %p29, %p30
      %p32 = scmp.ne.s32.totalorder %s24, %s26
      %p33 = scmp.eq.s32.totalorder %s21, 1
      %p34 = por %p32, %p33
      %p35 = scmp.ne.s32.totalorder %s26, %s27
      %p36 = scmp.eq.s32.totalorder %s21, 0
      %p37 = por %p35, %p36
      %p38 = scmp.ne.s32.totalorder %s26, %s27
      %p39 = scmp.eq.s32.totalorder %s22, 1
      %p40 = por %p38, %p39
      %p42 = scmp.ne.s32.totalorder %s27, %s41
      %p43 = scmp.eq.s32.totalorder %s22, 0
      %p44 = por %p42, %p43
      %s46 = sadd.s32 %s45, 1
      %p49 = scmp.eq.s32.totalorder %s16, 1
      %p50 = scmp.ne.s32.totalorder %s45, %s47
      %p51 = scmp.eq.s32.totalorder %s16, 0
      %p52 = por %p50, %p51
      %p53 = scmp.ne.s32.totalorder %s45, %s47
      %p54 = scmp.eq.s32.totalorder %s21, 1
      %p55 = por %p53, %p54
      %p56 = scmp.ne.s32.totalorder %s47, %s48
      %p57 = scmp.eq.s32.totalorder %s21, 0
      %p58 = por %p56, %p57
      %p59 = scmp.ne.s32.totalorder %s47, %s48
      %p60 = scmp.eq.s32.totalorder %s22, 1
      %p61 = por %p59, %p60
      %p63 = scmp.ne.s32.totalorder %s48, %s62
      %p64 = scmp.eq.s32.totalorder %s22, 0
      %p65 = por %p63, %p64
      %s66 = ssub.s32 %s16, %s23
      %p67 = scmp.eq.s32.totalorder %s66, 0
      %s69 = sadd.s32 %s68, 1
      %s70 = scalar_select %p67, %s68, %s69
      %p73 = pneg %p67
      %p74 = scmp.eq.s32.totalorder %s16, 1
      %p75 = por %p73, %p74
      %p76 = scmp.ne.s32.totalorder %s68, %s71
      %p77 = scmp.eq.s32.totalorder %s16, 0
      %p78 = por %p76, %p77
      %p79 = scmp.ne.s32.totalorder %s68, %s71
      %p80 = scmp.eq.s32.totalorder %s21, 1
      %p81 = por %p79, %p80
      %p82 = scmp.ne.s32.totalorder %s71, %s72
      %p83 = scmp.eq.s32.totalorder %s21, 0
      %p84 = por %p82, %p83
      %p85 = scmp.ne.s32.totalorder %s71, %s72
      %p86 = scmp.eq.s32.totalorder %s22, 1
      %p87 = por %p85, %p86
      %p89 = scmp.ne.s32.totalorder %s72, %s88
      %p90 = scmp.eq.s32.totalorder %s22, 0
      %p91 = por %p89, %p90
      %s92 = ssub.s32 %s16, %s23
      %p93 = scmp.eq.s32.totalorder %s92, 0
      %s95 = sadd.s32 %s94, 1
      %s96 = scalar_select %p93, %s94, %s95
      %p99 = pneg %p93
      %p100 = scmp.eq.s32.totalorder %s16, 1
      %p101 = por %p99, %p100
      %p102 = scmp.ne.s32.totalorder %s94, %s97
      %p103 = scmp.eq.s32.totalorder %s16, 0
      %p104 = por %p102, %p103
      %p105 = scmp.ne.s32.totalorder %s94, %s97
      %p106 = scmp.eq.s32.totalorder %s21, 1
      %p107 = por %p105, %p106
      %p108 = scmp.ne.s32.totalorder %s97, %s98
      %p109 = scmp.eq.s32.totalorder %s21, 0
      %p110 = por %p108, %p109
      %p111 = scmp.ne.s32.totalorder %s97, %s98
      %p112 = scmp.eq.s32.totalorder %s22, 1
      %p113 = por %p111, %p112
      %p115 = scmp.ne.s32.totalorder %s98, %s114
      %p116 = scmp.eq.s32.totalorder %s22, 0
      %p117 = por %p115, %p116
      %s118 = ssub.s32 %s16, %s23
      %p119 = scmp.eq.s32.totalorder %s118, 0
      %s121 = sadd.s32 %s120, 1
      %s122 = scalar_select %p119, %s120, %s121
      %p125 = pneg %p119
      %p126 = scmp.eq.s32.totalorder %s16, 1
      %p127 = por %p125, %p126
      %p128 = scmp.ne.s32.totalorder %s120, %s123
      %p129 = scmp.eq.s32.totalorder %s16, 0
      %p130 = por %p128, %p129
      %p131 = scmp.ne.s32.totalorder %s120, %s123
      %p132 = scmp.eq.s32.totalorder %s21, 1
      %p133 = por %p131, %p132
      %p134 = scmp.ne.s32.totalorder %s123, %s124
      %p135 = scmp.eq.s32.totalorder %s21, 0
      %p136 = por %p134, %p135
      %p137 = scmp.ne.s32.totalorder %s123, %s124
      %p138 = scmp.eq.s32.totalorder %s22, 1
      %p139 = por %p137, %p138
      %p141 = scmp.ne.s32.totalorder %s124, %s140
      %p142 = scmp.eq.s32.totalorder %s22, 0
      %p143 = por %p141, %p142
      %s144 = ssub.s32 %s16, %s23
      %p145 = scmp.eq.s32.totalorder %s144, 0
      %s147 = sadd.s32 %s146, 1
      %s148 = scalar_select %p145, %s146, %s147
      %p151 = pneg %p145
      %p152 = scmp.eq.s32.totalorder %s16, 1
      %p153 = por %p151, %p152
      %p154 = scmp.ne.s32.totalorder %s146, %s149
      %p155 = scmp.eq.s32.totalorder %s16, 0
      %p156 = por %p154, %p155
      %p157 = scmp.ne.s32.totalorder %s146, %s149
      %p158 = scmp.eq.s32.totalorder %s21, 1
      %p159 = por %p157, %p158
      %p160 = scmp.ne.s32.totalorder %s149, %s150
      %p161 = scmp.eq.s32.totalorder %s21, 0
      %p162 = por %p160, %p161
      %p163 = scmp.ne.s32.totalorder %s149, %s150
      %p164 = scmp.eq.s32.totalorder %s22, 1
      %p165 = por %p163, %p164
      %p167 = scmp.ne.s32.totalorder %s150, %s166
      %p168 = scmp.eq.s32.totalorder %s22, 0
      %p169 = por %p167, %p168
      %p170 = scmp.le.s32.totalorder 1, %s16
      %p171 = scmp.lt.s32.totalorder %s16, 3
      %p172 = pnand %p170, %p171
      %p173 = pneg %p172
      // Predicated region
      $region9: #{tpu_custom_call.1} parent=5 // pred_check
        _
      $region10: #{tpu_custom_call.1} parent=5 // pred_check_branch
        %175 = sbr.rel (%p172) target = $region12
      $region11: #{tpu_custom_call.1} parent=5 // pred_region
        %s176 = ssub.s32 %s16, 1
        // Predicated region
        $region13: #{tpu_custom_call.1} parent=11 // pred_check
          %p177 = pneg %p37
        $region14: #{tpu_custom_call.1} parent=11 // pred_check_branch
          %179 = sbr.rel (%p177) target = $region16
        $region15: #{tpu_custom_call.1} parent=11 // pred_region
          %s181 = ssub.s32 2048, 2048
          %182 = vsyncadd [#allocation3], %s181
          %s183 = sshll.u32 [#allocation2], 4
          %s184 = int_to_ptr.vmem [resolvable:$true] %s183
          %189 = dma.hbm_to_vmem [thread:$0]  %s0, 2048, %s184, [#allocation3], 256, 256, 16
        $region16: #{tpu_custom_call.1} parent=11 // pred_fallthru
          _
        // Predicated region
        $region17: #{tpu_custom_call.1} parent=11 // pred_check
          %p190 = pneg %p58
        $region18: #{tpu_custom_call.1} parent=11 // pred_check_branch
          %192 = sbr.rel (%p190) target = $region20
        $region19: #{tpu_custom_call.1} parent=11 // pred_region
          %s194 = ssub.s32 2048, 2048
          %195 = vsyncadd [#allocation6], %s194
          %s196 = sshll.u32 [#allocation5], 4
          %s197 = int_to_ptr.vmem [resolvable:$true] %s196
          %202 = dma.hbm_to_vmem [thread:$0]  %s1, 2048, %s197, [#allocation6], 256, 256, 16
        $region20: #{tpu_custom_call.1} parent=11 // pred_fallthru
          _
      $region12: #{tpu_custom_call.1} parent=5 // pred_fallthru
        _
      %p203 = scmp.lt.s32.totalorder %s16, 2
      // Predicated region
      $region21: #{tpu_custom_call.1} parent=5 // pred_check
        %p204 = pneg %p203
      $region22: #{tpu_custom_call.1} parent=5 // pred_check_branch
        %206 = sbr.rel (%p204) target = $region24
      $region23: #{tpu_custom_call.1} parent=5 // pred_region
        // Predicated region
        $region25: #{tpu_custom_call.1} parent=23 // pred_check
          %p207 = pneg %p78
        $region26: #{tpu_custom_call.1} parent=23 // pred_check_branch
          %209 = sbr.rel (%p207) target = $region28
        $region27: #{tpu_custom_call.1} parent=23 // pred_region
          %s210 = sand.u32 %s16, 1
          %s211 = scalar_lea.sflag [#allocation3], %s210
          %s212 = sand.u32 %s68, 1
          %s213 = smul.addr %s212, 512
          %s214 = scalar_lea.vmem [#allocation7], %s213
          %s215 = smul.u32 2, %s16
          %s217 = ssub.s32 8192, 8192
          %218 = vsyncadd %s211, %s217
          %s219 = smul.addr %s215, 64
          %s220 = scalar_lea.hbm %s2, %s219
          %s221 = sshll.u32 %s214, 4
          %s222 = int_to_ptr.vmem [resolvable:$true] %s221
          %227 = dma.hbm_to_vmem [thread:$0]  %s220, 8192, %s222, %s211, 256, 128, 8
        $region28: #{tpu_custom_call.1} parent=23 // pred_fallthru
          _
        // Predicated region
        $region29: #{tpu_custom_call.1} parent=23 // pred_check
          %p228 = pneg %p104
        $region30: #{tpu_custom_call.1} parent=23 // pred_check_branch
          %230 = sbr.rel (%p228) target = $region32
        $region31: #{tpu_custom_call.1} parent=23 // pred_region
          %s231 = smul.u32 2, %s16
          %p232 = scmp.lt.s32.totalorder %s231, 3
          %s233 = scalar_select %p232, %s231, 3
          %s234 = scalar_lea.vmem %s3, %s233
          %s235 = smul.u32 2, %s16
        $region32: #{tpu_custom_call.1} parent=23 // pred_fallthru
          _
        // Predicated region
        $region33: #{tpu_custom_call.1} parent=23 // pred_check
          %p236 = pneg %p130
        $region34: #{tpu_custom_call.1} parent=23 // pred_check_branch
          %238 = sbr.rel (%p236) target = $region36
        $region35: #{tpu_custom_call.1} parent=23 // pred_region
          %s239 = sand.u32 %s16, 1
          %s240 = scalar_lea.sflag [#allocation3], %s239
          %s241 = sand.u32 %s120, 1
          %s242 = smul.addr %s241, 2
          %s243 = scalar_lea.vmem [#allocation8], %s242
          %s244 = smul.u32 2, %s16
          %s246 = ssub.s32 32, 32
          %247 = vsyncadd %s240, %s246
          %s248 = smul.addr %s244, 16
          %s249 = scalar_lea.hbm %s4, %s248
          %s251 = sshll.u32 %s243, 4
          %s252 = int_to_ptr.vmem [resolvable:$true] %s251
          %254 = dma.hbm_to_vmem [thread:$0]  %s249, 32, %s252, %s240
        $region36: #{tpu_custom_call.1} parent=23 // pred_fallthru
          _
      $region24: #{tpu_custom_call.1} parent=5 // pred_fallthru
        _
      %p255 = scmp.le.s32.totalorder 1, %s16
      %p256 = scmp.lt.s32.totalorder %s16, 3
      %p257 = pnand %p255, %p256
      %p258 = pneg %p257
      // Predicated region
      $region37: #{tpu_custom_call.1} parent=5 // pred_check
        _
      $region38: #{tpu_custom_call.1} parent=5 // pred_check_branch
        %260 = sbr.rel (%p257) target = $region40
      $region39: #{tpu_custom_call.1} parent=5 // pred_region
        %s261 = ssub.s32 %s16, 1
        // Predicated region
        $region41: #{tpu_custom_call.1} parent=39 // pred_check
          %p262 = pneg %p37
        $region42: #{tpu_custom_call.1} parent=39 // pred_check_branch
          %264 = sbr.rel (%p262) target = $region44
        $region43: #{tpu_custom_call.1} parent=39 // pred_region
          %265 = dma.done [#allocation3], 2048
        $region44: #{tpu_custom_call.1} parent=39 // pred_fallthru
          _
        // Predicated region
        $region45: #{tpu_custom_call.1} parent=39 // pred_check
          %p266 = pneg %p58
        $region46: #{tpu_custom_call.1} parent=39 // pred_check_branch
          %268 = sbr.rel (%p266) target = $region48
        $region47: #{tpu_custom_call.1} parent=39 // pred_region
          %269 = dma.done [#allocation6], 2048
        $region48: #{tpu_custom_call.1} parent=39 // pred_fallthru
          _
        %s270 = sand.u32 %s21, 1
        %s271 = scalar_lea.sflag [#allocation3], %s270
        %s272 = sand.u32 %s71, 1
        %s273 = smul.addr %s272, 512
        %s274 = scalar_lea.vmem [#allocation7], %s273
        // Predicated region
        $region49: #{tpu_custom_call.1} parent=39 // pred_check
          %p275 = pneg %p84
        $region50: #{tpu_custom_call.1} parent=39 // pred_check_branch
          %277 = sbr.rel (%p275) target = $region52
        $region51: #{tpu_custom_call.1} parent=39 // pred_region
          %278 = dma.done %s271, 8192
        $region52: #{tpu_custom_call.1} parent=39 // pred_fallthru
          _
        %s279 = sand.u32 %s21, 1
        %s280 = scalar_lea.sflag [#allocation3], %s279
        %s281 = sand.u32 %s123, 1
        %s282 = smul.addr %s281, 2
        %s283 = scalar_lea.vmem [#allocation8], %s282
        // Predicated region
        $region53: #{tpu_custom_call.1} parent=39 // pred_check
          %p284 = pneg %p136
        $region54: #{tpu_custom_call.1} parent=39 // pred_check_branch
          %286 = sbr.rel (%p284) target = $region56
        $region55: #{tpu_custom_call.1} parent=39 // pred_region
          %287 = dma.done %s280, 32
        $region56: #{tpu_custom_call.1} parent=39 // pred_fallthru
          _
        %p288 = pneg %p37
        %p289 = pneg %p34
        %p290 = pneg %p58
        %p291 = pneg %p55
        %s292 = sand.u32 %s21, 1
        %s293 = scalar_lea.sflag [#allocation3], %s292
        %s294 = sand.u32 %s71, 1
        %s295 = smul.addr %s294, 512
        %s296 = scalar_lea.vmem [#allocation7], %s295
        %p297 = pneg %p84
        %p298 = pneg %p81
        %s299 = smul.u32 2, %s21
        %p300 = scmp.lt.s32.totalorder %s299, 3
        %s301 = scalar_select %p300, %s299, 3
        %s302 = scalar_lea.vmem %s3, %s301
        %p303 = pneg %p110
        %p304 = pneg %p107
        %s305 = sand.u32 %s21, 1
        %s306 = scalar_lea.sflag [#allocation3], %s305
        %s307 = sand.u32 %s123, 1
        %s308 = smul.addr %s307, 2
        %s309 = scalar_lea.vmem [#allocation8], %s308
        %p310 = pneg %p136
        %p311 = pneg %p133
        %p312 = pneg %p162
        %p313 = pneg %p159
        %s314 = sand.u32 %s149, 1
        %s315 = scalar_lea.sflag [#allocation4], %s314
        %s316 = sand.u32 %s149, 1
        %s317 = smul.addr %s316, 128
        %s318 = scalar_lea.vmem [#allocation9], %s317
        %s319 = smul.u32 2, %s21
        %s320 = smul.u32 2, %s21
        %p321 = scmp.lt.s32.totalorder %s320, 3
        %s322 = scalar_select %p321, %s320, 3
        %s323 = scalar_lea.vmem %s3, %s322
        %s324 = smul.u32 2, %s21
        %s325 = smul.u32 2, %s21
        %s326 = smul.u32 2, %s21
        %v327 = vld [vmem:[%s274] sm:$0xff]
        %v328 = vld [vmem:[%s274 + $0x8] sm:$0xff]
        %v329 = vld [vmem:[%s274 + $0x10] sm:$0xff]
        %v330 = vld [vmem:[%s274 + $0x18] sm:$0xff]
        %v331 = vld [vmem:[%s274 + $0x20] sm:$0xff]
        %v332 = vld [vmem:[%s274 + $0x28] sm:$0xff]
        %v333 = vld [vmem:[%s274 + $0x30] sm:$0xff]
        %v334 = vld [vmem:[%s274 + $0x38] sm:$0xff]
        %v335 = vld [vmem:[%s274 + $0x40] sm:$0xff]
        %v336 = vld [vmem:[%s274 + $0x48] sm:$0xff]
        %v337 = vld [vmem:[%s274 + $0x50] sm:$0xff]
        %v338 = vld [vmem:[%s274 + $0x58] sm:$0xff]
        %v339 = vld [vmem:[%s274 + $0x60] sm:$0xff]
        %v340 = vld [vmem:[%s274 + $0x68] sm:$0xff]
        %v341 = vld [vmem:[%s274 + $0x70] sm:$0xff]
        %v342 = vld [vmem:[%s274 + $0x78] sm:$0xff]
        %v343 = vld [vmem:[%s274 + $0x80] sm:$0xff]
        %v344 = vld [vmem:[%s274 + $0x88] sm:$0xff]
        %v345 = vld [vmem:[%s274 + $0x90] sm:$0xff]
        %v346 = vld [vmem:[%s274 + $0x98] sm:$0xff]
        %v347 = vld [vmem:[%s274 + $0xa0] sm:$0xff]
        %v348 = vld [vmem:[%s274 + $0xa8] sm:$0xff]
        %v349 = vld [vmem:[%s274 + $0xb0] sm:$0xff]
        %v350 = vld [vmem:[%s274 + $0xb8] sm:$0xff]
        %v351 = vld [vmem:[%s274 + $0xc0] sm:$0xff]
        %v352 = vld [vmem:[%s274 + $0xc8] sm:$0xff]
        %v353 = vld [vmem:[%s274 + $0xd0] sm:$0xff]
        %v354 = vld [vmem:[%s274 + $0xd8] sm:$0xff]
        %v355 = vld [vmem:[%s274 + $0xe0] sm:$0xff]
        %v356 = vld [vmem:[%s274 + $0xe8] sm:$0xff]
        %v357 = vld [vmem:[%s274 + $0xf0] sm:$0xff]
        %v358 = vld [vmem:[%s274 + $0xf8] sm:$0xff]
        %v359 = vld [vmem:[%s274 + $0x100] sm:$0xff]
        %v360 = vld [vmem:[%s274 + $0x108] sm:$0xff]
        %v361 = vld [vmem:[%s274 + $0x110] sm:$0xff]
        %v362 = vld [vmem:[%s274 + $0x118] sm:$0xff]
        %v363 = vld [vmem:[%s274 + $0x120] sm:$0xff]
        %v364 = vld [vmem:[%s274 + $0x128] sm:$0xff]
        %v365 = vld [vmem:[%s274 + $0x130] sm:$0xff]
        %v366 = vld [vmem:[%s274 + $0x138] sm:$0xff]
        %v367 = vld [vmem:[%s274 + $0x140] sm:$0xff]
        %v368 = vld [vmem:[%s274 + $0x148] sm:$0xff]
        %v369 = vld [vmem:[%s274 + $0x150] sm:$0xff]
        %v370 = vld [vmem:[%s274 + $0x158] sm:$0xff]
        %v371 = vld [vmem:[%s274 + $0x160] sm:$0xff]
        %v372 = vld [vmem:[%s274 + $0x168] sm:$0xff]
        %v373 = vld [vmem:[%s274 + $0x170] sm:$0xff]
        %v374 = vld [vmem:[%s274 + $0x178] sm:$0xff]
        %v375 = vld [vmem:[%s274 + $0x180] sm:$0xff]
        %v376 = vld [vmem:[%s274 + $0x188] sm:$0xff]
        %v377 = vld [vmem:[%s274 + $0x190] sm:$0xff]
        %v378 = vld [vmem:[%s274 + $0x198] sm:$0xff]
        %v379 = vld [vmem:[%s274 + $0x1a0] sm:$0xff]
        %v380 = vld [vmem:[%s274 + $0x1a8] sm:$0xff]
        %v381 = vld [vmem:[%s274 + $0x1b0] sm:$0xff]
        %v382 = vld [vmem:[%s274 + $0x1b8] sm:$0xff]
        %v383 = vld [vmem:[%s274 + $0x1c0] sm:$0xff]
        %v384 = vld [vmem:[%s274 + $0x1c8] sm:$0xff]
        %v385 = vld [vmem:[%s274 + $0x1d0] sm:$0xff]
        %v386 = vld [vmem:[%s274 + $0x1d8] sm:$0xff]
        %v387 = vld [vmem:[%s274 + $0x1e0] sm:$0xff]
        %v388 = vld [vmem:[%s274 + $0x1e8] sm:$0xff]
        %v389 = vld [vmem:[%s274 + $0x1f0] sm:$0xff]
        %v390 = vld [vmem:[%s274 + $0x1f8] sm:$0xff]
        %v391 = vld [vmem:[%s323] sm:$0x3]
        %v392 = vld [vmem:[%s283] sm:$0x3]
        %v393 = vld [vmem:[#allocation2] sm:$0xff]
        %v394 = vld [vmem:[#allocation2 + $0x8] sm:$0xff]
        %v395 = vld [vmem:[#allocation2 + $0x10] sm:$0xff]
        %v396 = vld [vmem:[#allocation2 + $0x18] sm:$0xff]
        %v397 = vld [vmem:[#allocation2 + $0x20] sm:$0xff]
        %v398 = vld [vmem:[#allocation2 + $0x28] sm:$0xff]
        %v399 = vld [vmem:[#allocation2 + $0x30] sm:$0xff]
        %v400 = vld [vmem:[#allocation2 + $0x38] sm:$0xff]
        %v401 = vld [vmem:[#allocation2 + $0x40] sm:$0xff]
        %v402 = vld [vmem:[#allocation2 + $0x48] sm:$0xff]
        %v403 = vld [vmem:[#allocation2 + $0x50] sm:$0xff]
        %v404 = vld [vmem:[#allocation2 + $0x58] sm:$0xff]
        %v405 = vld [vmem:[#allocation2 + $0x60] sm:$0xff]
        %v406 = vld [vmem:[#allocation2 + $0x68] sm:$0xff]
        %v407 = vld [vmem:[#allocation2 + $0x70] sm:$0xff]
        %v408 = vld [vmem:[#allocation2 + $0x78] sm:$0xff]
        %v425 = vunpack.c.l.b16 %v393
        %v426 = vunpack.c.h.b16 %v393
        %v427 = vunpack.c.l.b16 %v394
        %v428 = vunpack.c.h.b16 %v394
        %v429 = vunpack.c.l.b16 %v395
        %v430 = vunpack.c.h.b16 %v395
        %v431 = vunpack.c.l.b16 %v396
        %v432 = vunpack.c.h.b16 %v396
        %v433 = vunpack.c.l.b16 %v397
        %v434 = vunpack.c.h.b16 %v397
        %v435 = vunpack.c.l.b16 %v398
        %v436 = vunpack.c.h.b16 %v398
        %v437 = vunpack.c.l.b16 %v399
        %v438 = vunpack.c.h.b16 %v399
        %v439 = vunpack.c.l.b16 %v400
        %v440 = vunpack.c.h.b16 %v400
        %v441 = vunpack.c.l.b16 %v401
        %v442 = vunpack.c.h.b16 %v401
        %v443 = vunpack.c.l.b16 %v402
        %v444 = vunpack.c.h.b16 %v402
        %v445 = vunpack.c.l.b16 %v403
        %v446 = vunpack.c.h.b16 %v403
        %v447 = vunpack.c.l.b16 %v404
        %v448 = vunpack.c.h.b16 %v404
        %v449 = vunpack.c.l.b16 %v405
        %v450 = vunpack.c.h.b16 %v405
        %v451 = vunpack.c.l.b16 %v406
        %v452 = vunpack.c.h.b16 %v406
        %v453 = vunpack.c.l.b16 %v407
        %v454 = vunpack.c.h.b16 %v407
        %v455 = vunpack.c.l.b16 %v408
        %v456 = vunpack.c.h.b16 %v408
        %v457 = vpack.c.b16 %v429, %v425
        %v458 = vpack.c.b16 %v430, %v426
        %v459 = vpack.c.b16 %v431, %v427
        %v460 = vpack.c.b16 %v432, %v428
        %v461 = vpack.c.b16 %v437, %v433
        %v462 = vpack.c.b16 %v438, %v434
        %v463 = vpack.c.b16 %v439, %v435
        %v464 = vpack.c.b16 %v440, %v436
        %v465 = vpack.c.b16 %v445, %v441
        %v466 = vpack.c.b16 %v446, %v442
        %v467 = vpack.c.b16 %v447, %v443
        %v468 = vpack.c.b16 %v448, %v444
        %v469 = vpack.c.b16 %v453, %v449
        %v470 = vpack.c.b16 %v454, %v450
        %v471 = vpack.c.b16 %v455, %v451
        %v472 = vpack.c.b16 %v456, %v452
        %v553 = vunpack.c.l.b16 %v327
        %v554 = vunpack.c.h.b16 %v327
        %v555 = vunpack.c.l.b16 %v328
        %v556 = vunpack.c.h.b16 %v328
        %v557 = vunpack.c.l.b16 %v329
        %v558 = vunpack.c.h.b16 %v329
        %v559 = vunpack.c.l.b16 %v330
        %v560 = vunpack.c.h.b16 %v330
        %v561 = vunpack.c.l.b16 %v331
        %v562 = vunpack.c.h.b16 %v331
        %v563 = vunpack.c.l.b16 %v332
        %v564 = vunpack.c.h.b16 %v332
        %v565 = vunpack.c.l.b16 %v333
        %v566 = vunpack.c.h.b16 %v333
        %v567 = vunpack.c.l.b16 %v334
        %v568 = vunpack.c.h.b16 %v334
        %v569 = vunpack.c.l.b16 %v335
        %v570 = vunpack.c.h.b16 %v335
        %v571 = vunpack.c.l.b16 %v336
        %v572 = vunpack.c.h.b16 %v336
        %v573 = vunpack.c.l.b16 %v337
        %v574 = vunpack.c.h.b16 %v337
        %v575 = vunpack.c.l.b16 %v338
        %v576 = vunpack.c.h.b16 %v338
        %v577 = vunpack.c.l.b16 %v339
        %v578 = vunpack.c.h.b16 %v339
        %v579 = vunpack.c.l.b16 %v340
        %v580 = vunpack.c.h.b16 %v340
        %v581 = vunpack.c.l.b16 %v341
        %v582 = vunpack.c.h.b16 %v341
        %v583 = vunpack.c.l.b16 %v342
        %v584 = vunpack.c.h.b16 %v342
        %v585 = vunpack.c.l.b16 %v343
        %v586 = vunpack.c.h.b16 %v343
        %v587 = vunpack.c.l.b16 %v344
        %v588 = vunpack.c.h.b16 %v344
        %v589 = vunpack.c.l.b16 %v345
        %v590 = vunpack.c.h.b16 %v345
        %v591 = vunpack.c.l.b16 %v346
        %v592 = vunpack.c.h.b16 %v346
        %v593 = vunpack.c.l.b16 %v347
        %v594 = vunpack.c.h.b16 %v347
        %v595 = vunpack.c.l.b16 %v348
        %v596 = vunpack.c.h.b16 %v348
        %v597 = vunpack.c.l.b16 %v349
        %v598 = vunpack.c.h.b16 %v349
        %v599 = vunpack.c.l.b16 %v350
        %v600 = vunpack.c.h.b16 %v350
        %v601 = vunpack.c.l.b16 %v351
        %v602 = vunpack.c.h.b16 %v351
        %v603 = vunpack.c.l.b16 %v352
        %v604 = vunpack.c.h.b16 %v352
        %v605 = vunpack.c.l.b16 %v353
        %v606 = vunpack.c.h.b16 %v353
        %v607 = vunpack.c.l.b16 %v354
        %v608 = vunpack.c.h.b16 %v354
        %v609 = vunpack.c.l.b16 %v355
        %v610 = vunpack.c.h.b16 %v355
        %v611 = vunpack.c.l.b16 %v356
        %v612 = vunpack.c.h.b16 %v356
        %v613 = vunpack.c.l.b16 %v357
        %v614 = vunpack.c.h.b16 %v357
        %v615 = vunpack.c.l.b16 %v358
        %v616 = vunpack.c.h.b16 %v358
        %v617 = vunpack.c.l.b16 %v359
        %v618 = vunpack.c.h.b16 %v359
        %v619 = vunpack.c.l.b16 %v360
        %v620 = vunpack.c.h.b16 %v360
        %v621 = vunpack.c.l.b16 %v361
        %v622 = vunpack.c.h.b16 %v361
        %v623 = vunpack.c.l.b16 %v362
        %v624 = vunpack.c.h.b16 %v362
        %v625 = vunpack.c.l.b16 %v363
        %v626 = vunpack.c.h.b16 %v363
        %v627 = vunpack.c.l.b16 %v364
        %v628 = vunpack.c.h.b16 %v364
        %v629 = vunpack.c.l.b16 %v365
        %v630 = vunpack.c.h.b16 %v365
        %v631 = vunpack.c.l.b16 %v366
        %v632 = vunpack.c.h.b16 %v366
        %v633 = vunpack.c.l.b16 %v367
        %v634 = vunpack.c.h.b16 %v367
        %v635 = vunpack.c.l.b16 %v368
        %v636 = vunpack.c.h.b16 %v368
        %v637 = vunpack.c.l.b16 %v369
        %v638 = vunpack.c.h.b16 %v369
        %v639 = vunpack.c.l.b16 %v370
        %v640 = vunpack.c.h.b16 %v370
        %v641 = vunpack.c.l.b16 %v371
        %v642 = vunpack.c.h.b16 %v371
        %v643 = vunpack.c.l.b16 %v372
        %v644 = vunpack.c.h.b16 %v372
        %v645 = vunpack.c.l.b16 %v373
        %v646 = vunpack.c.h.b16 %v373
        %v647 = vunpack.c.l.b16 %v374
        %v648 = vunpack.c.h.b16 %v374
        %v649 = vunpack.c.l.b16 %v375
        %v650 = vunpack.c.h.b16 %v375
        %v651 = vunpack.c.l.b16 %v376
        %v652 = vunpack.c.h.b16 %v376
        %v653 = vunpack.c.l.b16 %v377
        %v654 = vunpack.c.h.b16 %v377
        %v655 = vunpack.c.l.b16 %v378
        %v656 = vunpack.c.h.b16 %v378
        %v657 = vunpack.c.l.b16 %v379
        %v658 = vunpack.c.h.b16 %v379
        %v659 = vunpack.c.l.b16 %v380
        %v660 = vunpack.c.h.b16 %v380
        %v661 = vunpack.c.l.b16 %v381
        %v662 = vunpack.c.h.b16 %v381
        %v663 = vunpack.c.l.b16 %v382
        %v664 = vunpack.c.h.b16 %v382
        %v665 = vunpack.c.l.b16 %v383
        %v666 = vunpack.c.h.b16 %v383
        %v667 = vunpack.c.l.b16 %v384
        %v668 = vunpack.c.h.b16 %v384
        %v669 = vunpack.c.l.b16 %v385
        %v670 = vunpack.c.h.b16 %v385
        %v671 = vunpack.c.l.b16 %v386
        %v672 = vunpack.c.h.b16 %v386
        %v673 = vunpack.c.l.b16 %v387
        %v674 = vunpack.c.h.b16 %v387
        %v675 = vunpack.c.l.b16 %v388
        %v676 = vunpack.c.h.b16 %v388
        %v677 = vunpack.c.l.b16 %v389
        %v678 = vunpack.c.h.b16 %v389
        %v679 = vunpack.c.l.b16 %v390
        %v680 = vunpack.c.h.b16 %v390
        %v681 = vpack.c.b16 %v555, %v553
        %v682 = vpack.c.b16 %v556, %v554
        %v683 = vpack.c.b16 %v559, %v557
        %v684 = vpack.c.b16 %v560, %v558
        %v685 = vpack.c.b16 %v563, %v561
        %v686 = vpack.c.b16 %v564, %v562
        %v687 = vpack.c.b16 %v567, %v565
        %v688 = vpack.c.b16 %v568, %v566
        %v689 = vpack.c.b16 %v571, %v569
        %v690 = vpack.c.b16 %v572, %v570
        %v691 = vpack.c.b16 %v575, %v573
        %v692 = vpack.c.b16 %v576, %v574
        %v693 = vpack.c.b16 %v579, %v577
        %v694 = vpack.c.b16 %v580, %v578
        %v695 = vpack.c.b16 %v583, %v581
        %v696 = vpack.c.b16 %v584, %v582
        %v697 = vpack.c.b16 %v587, %v585
        %v698 = vpack.c.b16 %v588, %v586
        %v699 = vpack.c.b16 %v591, %v589
        %v700 = vpack.c.b16 %v592, %v590
        %v701 = vpack.c.b16 %v595, %v593
        %v702 = vpack.c.b16 %v596, %v594
        %v703 = vpack.c.b16 %v599, %v597
        %v704 = vpack.c.b16 %v600, %v598
        %v705 = vpack.c.b16 %v603, %v601
        %v706 = vpack.c.b16 %v604, %v602
        %v707 = vpack.c.b16 %v607, %v605
        %v708 = vpack.c.b16 %v608, %v606
        %v709 = vpack.c.b16 %v611, %v609
        %v710 = vpack.c.b16 %v612, %v610
        %v711 = vpack.c.b16 %v615, %v613
        %v712 = vpack.c.b16 %v616, %v614
        %v713 = vpack.c.b16 %v619, %v617
        %v714 = vpack.c.b16 %v620, %v618
        %v715 = vpack.c.b16 %v623, %v621
        %v716 = vpack.c.b16 %v624, %v622
        %v717 = vpack.c.b16 %v627, %v625
        %v718 = vpack.c.b16 %v628, %v626
        %v719 = vpack.c.b16 %v631, %v629
        %v720 = vpack.c.b16 %v632, %v630
        %v721 = vpack.c.b16 %v635, %v633
        %v722 = vpack.c.b16 %v636, %v634
        %v723 = vpack.c.b16 %v639, %v637
        %v724 = vpack.c.b16 %v640, %v638
        %v725 = vpack.c.b16 %v643, %v641
        %v726 = vpack.c.b16 %v644, %v642
        %v727 = vpack.c.b16 %v647, %v645
        %v728 = vpack.c.b16 %v648, %v646
        %v729 = vpack.c.b16 %v651, %v649
        %v730 = vpack.c.b16 %v652, %v650
        %v731 = vpack.c.b16 %v655, %v653
        %v732 = vpack.c.b16 %v656, %v654
        %v733 = vpack.c.b16 %v659, %v657
        %v734 = vpack.c.b16 %v660, %v658
        %v735 = vpack.c.b16 %v663, %v661
        %v736 = vpack.c.b16 %v664, %v662
        %v737 = vpack.c.b16 %v667, %v665
        %v738 = vpack.c.b16 %v668, %v666
        %v739 = vpack.c.b16 %v671, %v669
        %v740 = vpack.c.b16 %v672, %v670
        %v741 = vpack.c.b16 %v675, %v673
        %v742 = vpack.c.b16 %v676, %v674
        %v743 = vpack.c.b16 %v679, %v677
        %v744 = vpack.c.b16 %v680, %v678
        %809 = vmatprep.subr.bf16.mxu0 %v696
        %810 = vmatpush1.bf16.msra.mxu0 %v695
        %811 = vmatprep.subr.bf16.mxu0 %v694
        %812 = vmatpush1.bf16.msra.mxu0 %v693
        %813 = vmatprep.subr.bf16.mxu0 %v692
        %814 = vmatpush1.bf16.msra.mxu0 %v691
        %815 = vmatprep.subr.bf16.mxu0 %v690
        %816 = vmatpush1.bf16.msra.mxu0 %v689
        %817 = vmatprep.subr.bf16.mxu0 %v688
        %818 = vmatpush1.bf16.msra.mxu0 %v687
        %819 = vmatprep.subr.bf16.mxu0 %v686
        %820 = vmatpush1.bf16.msra.mxu0 %v685
        %821 = vmatprep.subr.bf16.mxu0 %v684
        %822 = vmatpush1.bf16.msra.mxu0 %v683
        %823 = vmatprep.subr.bf16.mxu0 %v682
        %824 = vmatpush1.bf16.msra.mxu0 %v681
        %825 = vmatprep.subr.bf16.mxu0 %v712
        %826 = vmatpush2.bf16.msra.mxu0 %v711
        %827 = vmatprep.subr.bf16.mxu0 %v710
        %828 = vmatpush2.bf16.msra.mxu0 %v709
        %829 = vmatprep.subr.bf16.mxu0 %v708
        %830 = vmatpush2.bf16.msra.mxu0 %v707
        %831 = vmatprep.subr.bf16.mxu0 %v706
        %832 = vmatpush2.bf16.msra.mxu0 %v705
        %833 = vmatprep.subr.bf16.mxu0 %v704
        %834 = vmatpush2.bf16.msra.mxu0 %v703
        %835 = vmatprep.subr.bf16.mxu0 %v702
        %836 = vmatpush2.bf16.msra.mxu0 %v701
        %837 = vmatprep.subr.bf16.mxu0 %v700
        %838 = vmatpush2.bf16.msra.mxu0 %v699
        %839 = vmatprep.subr.bf16.mxu0 %v698
        %840 = vmatpush2.bf16.msra.mxu0 %v697
        %841 = vmatprep.mubr.bf16.mxu0 %v458
        %842 = vmatmul.mubr.bf16.gmra.mxu0 %v457
        %v843 = vpop.f32.mrf.mxu0
        %v844 = vadd.f32 0.0, %v843
        %v845 = vpop.f32.mrf.mxu0
        %v846 = vadd.f32 0.0, %v845
        %v847 = vpop.f32.mrf.mxu0
        %v848 = vadd.f32 0.0, %v847
        %v849 = vpop.f32.mrf.mxu0
        %v850 = vadd.f32 0.0, %v849
        %851 = vmatprep.mubr.bf16.mxu0 %v462
        %852 = vmatmul.mubr.bf16.gmra.mxu0 %v461
        %v853 = vpop.f32.mrf.mxu0
        %v854 = vadd.f32 0.0, %v853
        %v855 = vpop.f32.mrf.mxu0
        %v856 = vadd.f32 0.0, %v855
        %v857 = vpop.f32.mrf.mxu0
        %v858 = vadd.f32 0.0, %v857
        %v859 = vpop.f32.mrf.mxu0
        %v860 = vadd.f32 0.0, %v859
        %861 = vmatprep.mubr.bf16.mxu0 %v466
        %862 = vmatmul.mubr.bf16.gmra.mxu0 %v465
        %v863 = vpop.f32.mrf.mxu0
        %v864 = vadd.f32 0.0, %v863
        %v865 = vpop.f32.mrf.mxu0
        %v866 = vadd.f32 0.0, %v865
        %v867 = vpop.f32.mrf.mxu0
        %v868 = vadd.f32 0.0, %v867
        %v869 = vpop.f32.mrf.mxu0
        %v870 = vadd.f32 0.0, %v869
        %871 = vmatprep.mubr.bf16.mxu0 %v470
        %872 = vmatmul.mubr.bf16.gmra.mxu0 %v469
        %v873 = vpop.f32.mrf.mxu0
        %v874 = vadd.f32 0.0, %v873
        %v875 = vpop.f32.mrf.mxu0
        %v876 = vadd.f32 0.0, %v875
        %v877 = vpop.f32.mrf.mxu0
        %v878 = vadd.f32 0.0, %v877
        %v879 = vpop.f32.mrf.mxu0
        %v880 = vadd.f32 0.0, %v879
        %881 = vdwg.mxu0
        %882 = vmatprep.subr.bf16.mxu0 %v728
        %883 = vmatpush1.bf16.msra.mxu0 %v727
        %884 = vmatprep.subr.bf16.mxu0 %v726
        %885 = vmatpush1.bf16.msra.mxu0 %v725
        %886 = vmatprep.subr.bf16.mxu0 %v724
        %887 = vmatpush1.bf16.msra.mxu0 %v723
        %888 = vmatprep.subr.bf16.mxu0 %v722
        %889 = vmatpush1.bf16.msra.mxu0 %v721
        %890 = vmatprep.subr.bf16.mxu0 %v720
        %891 = vmatpush1.bf16.msra.mxu0 %v719
        %892 = vmatprep.subr.bf16.mxu0 %v718
        %893 = vmatpush1.bf16.msra.mxu0 %v717
        %894 = vmatprep.subr.bf16.mxu0 %v716
        %895 = vmatpush1.bf16.msra.mxu0 %v715
        %896 = vmatprep.subr.bf16.mxu0 %v714
        %897 = vmatpush1.bf16.msra.mxu0 %v713
        %898 = vmatprep.subr.bf16.mxu0 %v744
        %899 = vmatpush2.bf16.msra.mxu0 %v743
        %900 = vmatprep.subr.bf16.mxu0 %v742
        %901 = vmatpush2.bf16.msra.mxu0 %v741
        %902 = vmatprep.subr.bf16.mxu0 %v740
        %903 = vmatpush2.bf16.msra.mxu0 %v739
        %904 = vmatprep.subr.bf16.mxu0 %v738
        %905 = vmatpush2.bf16.msra.mxu0 %v737
        %906 = vmatprep.subr.bf16.mxu0 %v736
        %907 = vmatpush2.bf16.msra.mxu0 %v735
        %908 = vmatprep.subr.bf16.mxu0 %v734
        %909 = vmatpush2.bf16.msra.mxu0 %v733
        %910 = vmatprep.subr.bf16.mxu0 %v732
        %911 = vmatpush2.bf16.msra.mxu0 %v731
        %912 = vmatprep.subr.bf16.mxu0 %v730
        %913 = vmatpush2.bf16.msra.mxu0 %v729
        %914 = vmatprep.mubr.bf16.mxu0 %v460
        %915 = vmatmul.mubr.bf16.gmra.mxu0 %v459
        %v916 = vpop.f32.mrf.mxu0
        %v917 = vadd.f32 %v844, %v916
        %v918 = vpop.f32.mrf.mxu0
        %v919 = vadd.f32 %v846, %v918
        %v920 = vpop.f32.mrf.mxu0
        %v921 = vadd.f32 %v848, %v920
        %v922 = vpop.f32.mrf.mxu0
        %v923 = vadd.f32 %v850, %v922
        %924 = vmatprep.mubr.bf16.mxu0 %v464
        %925 = vmatmul.mubr.bf16.gmra.mxu0 %v463
        %v926 = vpop.f32.mrf.mxu0
        %v927 = vadd.f32 %v854, %v926
        %v928 = vpop.f32.mrf.mxu0
        %v929 = vadd.f32 %v856, %v928
        %v930 = vpop.f32.mrf.mxu0
        %v931 = vadd.f32 %v858, %v930
        %v932 = vpop.f32.mrf.mxu0
        %v933 = vadd.f32 %v860, %v932
        %934 = vmatprep.mubr.bf16.mxu0 %v468
        %935 = vmatmul.mubr.bf16.gmra.mxu0 %v467
        %v936 = vpop.f32.mrf.mxu0
        %v937 = vadd.f32 %v864, %v936
        %v938 = vpop.f32.mrf.mxu0
        %v939 = vadd.f32 %v866, %v938
        %v940 = vpop.f32.mrf.mxu0
        %v941 = vadd.f32 %v868, %v940
        %v942 = vpop.f32.mrf.mxu0
        %v943 = vadd.f32 %v870, %v942
        %944 = vmatprep.mubr.bf16.mxu0 %v472
        %945 = vmatmul.mubr.bf16.gmra.mxu0 %v471
        %v946 = vpop.f32.mrf.mxu0
        %v947 = vadd.f32 %v874, %v946
        %v948 = vpop.f32.mrf.mxu0
        %v949 = vadd.f32 %v876, %v948
        %v950 = vpop.f32.mrf.mxu0
        %v951 = vadd.f32 %v878, %v950
        %v952 = vpop.f32.mrf.mxu0
        %v953 = vadd.f32 %v880, %v952
        %954 = vdwg.mxu0
        %v955 = vadd.f32 %v917, %v921
        %v956 = vadd.f32 %v955, %v927
        %v957 = vadd.f32 %v956, %v931
        %v958 = vadd.f32 %v957, %v937
        %v959 = vadd.f32 %v958, %v941
        %v960 = vadd.f32 %v959, %v947
        %v961 = vadd.f32 %v960, %v951
        %v962 = vrot.slane %v961, 4
        %v963 = vadd.f32 %v961, %v962
        %v964 = vrot.slane %v963, 2
        %v965 = vadd.f32 %v963, %v964
        %v966 = vrot.slane %v965, 1
        %v967 = vadd.f32 %v965, %v966
        %v968 = vadd.f32 %v919, %v923
        %v969 = vadd.f32 %v968, %v929
        %v970 = vadd.f32 %v969, %v933
        %v971 = vadd.f32 %v970, %v939
        %v972 = vadd.f32 %v971, %v943
        %v973 = vadd.f32 %v972, %v949
        %v974 = vadd.f32 %v973, %v953
        %v975 = vrot.slane %v974, 4
        %v976 = vadd.f32 %v974, %v975
        %v977 = vrot.slane %v976, 2
        %v978 = vadd.f32 %v976, %v977
        %v979 = vrot.slane %v978, 1
        %v980 = vadd.f32 %v978, %v979
        %v981 = vrcp.pop 64.0
        %v982 = vmul.f32 %v967, %v981
        %v983 = vmul.f32 %v980, %v981
        %v984 = vsub.f32 %v917, %v982
        %v985 = vsub.f32 %v919, %v983
        %v986 = vsub.f32 %v921, %v982
        %v987 = vsub.f32 %v923, %v983
        %v988 = vsub.f32 %v927, %v982
        %v989 = vsub.f32 %v929, %v983
        %v990 = vsub.f32 %v931, %v982
        %v991 = vsub.f32 %v933, %v983
        %v992 = vsub.f32 %v937, %v982
        %v993 = vsub.f32 %v939, %v983
        %v994 = vsub.f32 %v941, %v982
        %v995 = vsub.f32 %v943, %v983
        %v996 = vsub.f32 %v947, %v982
        %v997 = vsub.f32 %v949, %v983
        %v998 = vsub.f32 %v951, %v982
        %v999 = vsub.f32 %v953, %v983
        %v1000 = vmul.f32 %v984, %v984
        %v1001 = vmul.f32 %v985, %v985
        %v1002 = vmul.f32 %v986, %v986
        %v1003 = vmul.f32 %v987, %v987
        %v1004 = vmul.f32 %v988, %v988
        %v1005 = vmul.f32 %v989, %v989
        %v1006 = vmul.f32 %v990, %v990
        %v1007 = vmul.f32 %v991, %v991
        %v1008 = vmul.f32 %v992, %v992
        %v1009 = vmul.f32 %v993, %v993
        %v1010 = vmul.f32 %v994, %v994
        %v1011 = vmul.f32 %v995, %v995
        %v1012 = vmul.f32 %v996, %v996
        %v1013 = vmul.f32 %v997, %v997
        %v1014 = vmul.f32 %v998, %v998
        %v1015 = vmul.f32 %v999, %v999
        %v1016 = vadd.f32 %v1000, %v1002
        %v1017 = vadd.f32 %v1016, %v1004
        %v1018 = vadd.f32 %v1017, %v1006
        %v1019 = vadd.f32 %v1018, %v1008
        %v1020 = vadd.f32 %v1019, %v1010
        %v1021 = vadd.f32 %v1020, %v1012
        %v1022 = vadd.f32 %v1021, %v1014
        %v1023 = vrot.slane %v1022, 4
        %v1024 = vadd.f32 %v1022, %v1023
        %v1025 = vrot.slane %v1024, 2
        %v1026 = vadd.f32 %v1024, %v1025
        %v1027 = vrot.slane %v1026, 1
        %v1028 = vadd.f32 %v1026, %v1027
        %v1029 = vadd.f32 %v1001, %v1003
        %v1030 = vadd.f32 %v1029, %v1005
        %v1031 = vadd.f32 %v1030, %v1007
        %v1032 = vadd.f32 %v1031, %v1009
        %v1033 = vadd.f32 %v1032, %v1011
        %v1034 = vadd.f32 %v1033, %v1013
        %v1035 = vadd.f32 %v1034, %v1015
        %v1036 = vrot.slane %v1035, 4
        %v1037 = vadd.f32 %v1035, %v1036
        %v1038 = vrot.slane %v1037, 2
        %v1039 = vadd.f32 %v1037, %v1038
        %v1040 = vrot.slane %v1039, 1
        %v1041 = vadd.f32 %v1039, %v1040
        %v1042 = vmul.f32 %v1028, %v981
        %v1043 = vmul.f32 %v1041, %v981
        %v1044 = vadd.f32 %v1042, 1e-05
        %v1045 = vadd.f32 %v1043, 1e-05
        %v1046 = vrsqrt.pop %v1044
        %v1047 = vrsqrt.pop %v1045
        %v1048 = vmul.f32 %v984, %v1046
        %v1049 = vmul.f32 %v985, %v1047
        %v1050 = vmul.f32 %v986, %v1046
        %v1051 = vmul.f32 %v987, %v1047
        %v1052 = vmul.f32 %v988, %v1046
        %v1053 = vmul.f32 %v989, %v1047
        %v1054 = vmul.f32 %v990, %v1046
        %v1055 = vmul.f32 %v991, %v1047
        %v1056 = vmul.f32 %v992, %v1046
        %v1057 = vmul.f32 %v993, %v1047
        %v1058 = vmul.f32 %v994, %v1046
        %v1059 = vmul.f32 %v995, %v1047
        %v1060 = vmul.f32 %v996, %v1046
        %v1061 = vmul.f32 %v997, %v1047
        %v1062 = vmul.f32 %v998, %v1046
        %v1063 = vmul.f32 %v999, %v1047
        %v1065 = vlaneseq
        %v1066 = vshrl.u32 %v1065, 7
        %v1067 = vsub.s32 0, %v1066
        %v1068 = vrot.slane %v391, %v1067
        %v1069 = vlaneseq
        %v1070 = vshrl.u32 %v1069, 7
        %v1071 = vsub.s32 1, %v1070
        %v1072 = vrot.slane %v391, %v1071
        %v1075 = vmul.f32 %v1048, %v1068
        %v1076 = vmul.f32 %v1049, %v1072
        %v1077 = vmul.f32 %v1050, %v1068
        %v1078 = vmul.f32 %v1051, %v1072
        %v1079 = vmul.f32 %v1052, %v1068
        %v1080 = vmul.f32 %v1053, %v1072
        %v1081 = vmul.f32 %v1054, %v1068
        %v1082 = vmul.f32 %v1055, %v1072
        %v1083 = vmul.f32 %v1056, %v1068
        %v1084 = vmul.f32 %v1057, %v1072
        %v1085 = vmul.f32 %v1058, %v1068
        %v1086 = vmul.f32 %v1059, %v1072
        %v1087 = vmul.f32 %v1060, %v1068
        %v1088 = vmul.f32 %v1061, %v1072
        %v1089 = vmul.f32 %v1062, %v1068
        %v1090 = vmul.f32 %v1063, %v1072
        %v1092 = vlaneseq
        %v1093 = vshrl.u32 %v1092, 7
        %v1094 = vsub.s32 0, %v1093
        %v1095 = vrot.slane %v392, %v1094
        %v1096 = vlaneseq
        %v1097 = vshrl.u32 %v1096, 7
        %v1098 = vsub.s32 1, %v1097
        %v1099 = vrot.slane %v392, %v1098
        %v1102 = vadd.f32 %v1075, %v1095
        %v1103 = vadd.f32 %v1076, %v1099
        %v1104 = vadd.f32 %v1077, %v1095
        %v1105 = vadd.f32 %v1078, %v1099
        %v1106 = vadd.f32 %v1079, %v1095
        %v1107 = vadd.f32 %v1080, %v1099
        %v1108 = vadd.f32 %v1081, %v1095
        %v1109 = vadd.f32 %v1082, %v1099
        %v1110 = vadd.f32 %v1083, %v1095
        %v1111 = vadd.f32 %v1084, %v1099
        %v1112 = vadd.f32 %v1085, %v1095
        %v1113 = vadd.f32 %v1086, %v1099
        %v1114 = vadd.f32 %v1087, %v1095
        %v1115 = vadd.f32 %v1088, %v1099
        %v1116 = vadd.f32 %v1089, %v1095
        %v1117 = vadd.f32 %v1090, %v1099
        %v1118 = vmax.f32 %v1102, 0.0
        %v1119 = vmax.f32 %v1103, 0.0
        %v1120 = vmax.f32 %v1104, 0.0
        %v1121 = vmax.f32 %v1105, 0.0
        %v1122 = vmax.f32 %v1106, 0.0
        %v1123 = vmax.f32 %v1107, 0.0
        %v1124 = vmax.f32 %v1108, 0.0
        %v1125 = vmax.f32 %v1109, 0.0
        %v1126 = vmax.f32 %v1110, 0.0
        %v1127 = vmax.f32 %v1111, 0.0
        %v1128 = vmax.f32 %v1112, 0.0
        %v1129 = vmax.f32 %v1113, 0.0
        %v1130 = vmax.f32 %v1114, 0.0
        %v1131 = vmax.f32 %v1115, 0.0
        %v1132 = vmax.f32 %v1116, 0.0
        %v1133 = vmax.f32 %v1117, 0.0
        %v1134 = vpack.c.bf16 %v1120, %v1118
        %v1135 = vpack.c.bf16 %v1121, %v1119
        %v1136 = vpack.c.bf16 %v1124, %v1122
        %v1137 = vpack.c.bf16 %v1125, %v1123
        %v1138 = vpack.c.bf16 %v1128, %v1126
        %v1139 = vpack.c.bf16 %v1129, %v1127
        %v1140 = vpack.c.bf16 %v1132, %v1130
        %v1141 = vpack.c.bf16 %v1133, %v1131
        %v1150 = vunpack.c.l.b16 %v1134
        %v1151 = vunpack.c.l.b16 %v1135
        %v1152 = vunpack.c.h.b16 %v1134
        %v1153 = vunpack.c.h.b16 %v1135
        %v1154 = vunpack.c.l.b16 %v1136
        %v1155 = vunpack.c.l.b16 %v1137
        %v1156 = vunpack.c.h.b16 %v1136
        %v1157 = vunpack.c.h.b16 %v1137
        %v1158 = vunpack.c.l.b16 %v1138
        %v1159 = vunpack.c.l.b16 %v1139
        %v1160 = vunpack.c.h.b16 %v1138
        %v1161 = vunpack.c.h.b16 %v1139
        %v1162 = vunpack.c.l.b16 %v1140
        %v1163 = vunpack.c.l.b16 %v1141
        %v1164 = vunpack.c.h.b16 %v1140
        %v1165 = vunpack.c.h.b16 %v1141
        %v1166 = vpack.c.b16 %v1151, %v1150
        %v1167 = vpack.c.b16 %v1153, %v1152
        %v1168 = vpack.c.b16 %v1155, %v1154
        %v1169 = vpack.c.b16 %v1157, %v1156
        %v1170 = vpack.c.b16 %v1159, %v1158
        %v1171 = vpack.c.b16 %v1161, %v1160
        %v1172 = vpack.c.b16 %v1163, %v1162
        %v1173 = vpack.c.b16 %v1165, %v1164
        %1182 = vst [vmem:[%s318] sm:$0xff] %v1166
        %1183 = vst [vmem:[%s318 + $0x8] sm:$0xff] %v1167
        %1184 = vst [vmem:[%s318 + $0x10] sm:$0xff] %v1168
        %1185 = vst [vmem:[%s318 + $0x18] sm:$0xff] %v1169
        %1186 = vst [vmem:[%s318 + $0x20] sm:$0xff] %v1170
        %1187 = vst [vmem:[%s318 + $0x28] sm:$0xff] %v1171
        %1188 = vst [vmem:[%s318 + $0x30] sm:$0xff] %v1172
        %1189 = vst [vmem:[%s318 + $0x38] sm:$0xff] %v1173
        %v1190 = vld [vmem:[#allocation5] sm:$0xff]
        %v1191 = vld [vmem:[#allocation5 + $0x8] sm:$0xff]
        %v1192 = vld [vmem:[#allocation5 + $0x10] sm:$0xff]
        %v1193 = vld [vmem:[#allocation5 + $0x18] sm:$0xff]
        %v1194 = vld [vmem:[#allocation5 + $0x20] sm:$0xff]
        %v1195 = vld [vmem:[#allocation5 + $0x28] sm:$0xff]
        %v1196 = vld [vmem:[#allocation5 + $0x30] sm:$0xff]
        %v1197 = vld [vmem:[#allocation5 + $0x38] sm:$0xff]
        %v1198 = vld [vmem:[#allocation5 + $0x40] sm:$0xff]
        %v1199 = vld [vmem:[#allocation5 + $0x48] sm:$0xff]
        %v1200 = vld [vmem:[#allocation5 + $0x50] sm:$0xff]
        %v1201 = vld [vmem:[#allocation5 + $0x58] sm:$0xff]
        %v1202 = vld [vmem:[#allocation5 + $0x60] sm:$0xff]
        %v1203 = vld [vmem:[#allocation5 + $0x68] sm:$0xff]
        %v1204 = vld [vmem:[#allocation5 + $0x70] sm:$0xff]
        %v1205 = vld [vmem:[#allocation5 + $0x78] sm:$0xff]
        %v1222 = vunpack.c.l.b16 %v1190
        %v1223 = vunpack.c.h.b16 %v1190
        %v1224 = vunpack.c.l.b16 %v1191
        %v1225 = vunpack.c.h.b16 %v1191
        %v1226 = vunpack.c.l.b16 %v1192
        %v1227 = vunpack.c.h.b16 %v1192
        %v1228 = vunpack.c.l.b16 %v1193
        %v1229 = vunpack.c.h.b16 %v1193
        %v1230 = vunpack.c.l.b16 %v1194
        %v1231 = vunpack.c.h.b16 %v1194
        %v1232 = vunpack.c.l.b16 %v1195
        %v1233 = vunpack.c.h.b16 %v1195
        %v1234 = vunpack.c.l.b16 %v1196
        %v1235 = vunpack.c.h.b16 %v1196
        %v1236 = vunpack.c.l.b16 %v1197
        %v1237 = vunpack.c.h.b16 %v1197
        %v1238 = vunpack.c.l.b16 %v1198
        %v1239 = vunpack.c.h.b16 %v1198
        %v1240 = vunpack.c.l.b16 %v1199
        %v1241 = vunpack.c.h.b16 %v1199
        %v1242 = vunpack.c.l.b16 %v1200
        %v1243 = vunpack.c.h.b16 %v1200
        %v1244 = vunpack.c.l.b16 %v1201
        %v1245 = vunpack.c.h.b16 %v1201
        %v1246 = vunpack.c.l.b16 %v1202
        %v1247 = vunpack.c.h.b16 %v1202
        %v1248 = vunpack.c.l.b16 %v1203
        %v1249 = vunpack.c.h.b16 %v1203
        %v1250 = vunpack.c.l.b16 %v1204
        %v1251 = vunpack.c.h.b16 %v1204
        %v1252 = vunpack.c.l.b16 %v1205
        %v1253 = vunpack.c.h.b16 %v1205
        %v1254 = vpack.c.b16 %v1226, %v1222
        %v1255 = vpack.c.b16 %v1227, %v1223
        %v1256 = vpack.c.b16 %v1228, %v1224
        %v1257 = vpack.c.b16 %v1229, %v1225
        %v1258 = vpack.c.b16 %v1234, %v1230
        %v1259 = vpack.c.b16 %v1235, %v1231
        %v1260 = vpack.c.b16 %v1236, %v1232
        %v1261 = vpack.c.b16 %v1237, %v1233
        %v1262 = vpack.c.b16 %v1242, %v1238
        %v1263 = vpack.c.b16 %v1243, %v1239
        %v1264 = vpack.c.b16 %v1244, %v1240
        %v1265 = vpack.c.b16 %v1245, %v1241
        %v1266 = vpack.c.b16 %v1250, %v1246
        %v1267 = vpack.c.b16 %v1251, %v1247
        %v1268 = vpack.c.b16 %v1252, %v1248
        %v1269 = vpack.c.b16 %v1253, %v1249
        %1286 = vmatprep.subr.bf16.mxu0 %v696
        %1287 = vmatpush1.bf16.msra.mxu0 %v695
        %1288 = vmatprep.subr.bf16.mxu0 %v694
        %1289 = vmatpush1.bf16.msra.mxu0 %v693
        %1290 = vmatprep.subr.bf16.mxu0 %v692
        %1291 = vmatpush1.bf16.msra.mxu0 %v691
        %1292 = vmatprep.subr.bf16.mxu0 %v690
        %1293 = vmatpush1.bf16.msra.mxu0 %v689
        %1294 = vmatprep.subr.bf16.mxu0 %v688
        %1295 = vmatpush1.bf16.msra.mxu0 %v687
        %1296 = vmatprep.subr.bf16.mxu0 %v686
        %1297 = vmatpush1.bf16.msra.mxu0 %v685
        %1298 = vmatprep.subr.bf16.mxu0 %v684
        %1299 = vmatpush1.bf16.msra.mxu0 %v683
        %1300 = vmatprep.subr.bf16.mxu0 %v682
        %1301 = vmatpush1.bf16.msra.mxu0 %v681
        %1302 = vmatprep.subr.bf16.mxu0 %v712
        %1303 = vmatpush2.bf16.msra.mxu0 %v711
        %1304 = vmatprep.subr.bf16.mxu0 %v710
        %1305 = vmatpush2.bf16.msra.mxu0 %v709
        %1306 = vmatprep.subr.bf16.mxu0 %v708
        %1307 = vmatpush2.bf16.msra.mxu0 %v707
        %1308 = vmatprep.subr.bf16.mxu0 %v706
        %1309 = vmatpush2.bf16.msra.mxu0 %v705
        %1310 = vmatprep.subr.bf16.mxu0 %v704
        %1311 = vmatpush2.bf16.msra.mxu0 %v703
        %1312 = vmatprep.subr.bf16.mxu0 %v702
        %1313 = vmatpush2.bf16.msra.mxu0 %v701
        %1314 = vmatprep.subr.bf16.mxu0 %v700
        %1315 = vmatpush2.bf16.msra.mxu0 %v699
        %1316 = vmatprep.subr.bf16.mxu0 %v698
        %1317 = vmatpush2.bf16.msra.mxu0 %v697
        %1318 = vmatprep.mubr.bf16.mxu0 %v1255
        %1319 = vmatmul.mubr.bf16.gmra.mxu0 %v1254
        %v1320 = vpop.f32.mrf.mxu0
        %v1321 = vadd.f32 0.0, %v1320
        %v1322 = vpop.f32.mrf.mxu0
        %v1323 = vadd.f32 0.0, %v1322
        %v1324 = vpop.f32.mrf.mxu0
        %v1325 = vadd.f32 0.0, %v1324
        %v1326 = vpop.f32.mrf.mxu0
        %v1327 = vadd.f32 0.0, %v1326
        %1328 = vmatprep.mubr.bf16.mxu0 %v1259
        %1329 = vmatmul.mubr.bf16.gmra.mxu0 %v1258
        %v1330 = vpop.f32.mrf.mxu0
        %v1331 = vadd.f32 0.0, %v1330
        %v1332 = vpop.f32.mrf.mxu0
        %v1333 = vadd.f32 0.0, %v1332
        %v1334 = vpop.f32.mrf.mxu0
        %v1335 = vadd.f32 0.0, %v1334
        %v1336 = vpop.f32.mrf.mxu0
        %v1337 = vadd.f32 0.0, %v1336
        %1338 = vmatprep.mubr.bf16.mxu0 %v1263
        %1339 = vmatmul.mubr.bf16.gmra.mxu0 %v1262
        %v1340 = vpop.f32.mrf.mxu0
        %v1341 = vadd.f32 0.0, %v1340
        %v1342 = vpop.f32.mrf.mxu0
        %v1343 = vadd.f32 0.0, %v1342
        %v1344 = vpop.f32.mrf.mxu0
        %v1345 = vadd.f32 0.0, %v1344
        %v1346 = vpop.f32.mrf.mxu0
        %v1347 = vadd.f32 0.0, %v1346
        %1348 = vmatprep.mubr.bf16.mxu0 %v1267
        %1349 = vmatmul.mubr.bf16.gmra.mxu0 %v1266
        %v1350 = vpop.f32.mrf.mxu0
        %v1351 = vadd.f32 0.0, %v1350
        %v1352 = vpop.f32.mrf.mxu0
        %v1353 = vadd.f32 0.0, %v1352
        %v1354 = vpop.f32.mrf.mxu0
        %v1355 = vadd.f32 0.0, %v1354
        %v1356 = vpop.f32.mrf.mxu0
        %v1357 = vadd.f32 0.0, %v1356
        %1358 = vdwg.mxu0
        %1359 = vmatprep.subr.bf16.mxu0 %v728
        %1360 = vmatpush1.bf16.msra.mxu0 %v727
        %1361 = vmatprep.subr.bf16.mxu0 %v726
        %1362 = vmatpush1.bf16.msra.mxu0 %v725
        %1363 = vmatprep.subr.bf16.mxu0 %v724
        %1364 = vmatpush1.bf16.msra.mxu0 %v723
        %1365 = vmatprep.subr.bf16.mxu0 %v722
        %1366 = vmatpush1.bf16.msra.mxu0 %v721
        %1367 = vmatprep.subr.bf16.mxu0 %v720
        %1368 = vmatpush1.bf16.msra.mxu0 %v719
        %1369 = vmatprep.subr.bf16.mxu0 %v718
        %1370 = vmatpush1.bf16.msra.mxu0 %v717
        %1371 = vmatprep.subr.bf16.mxu0 %v716
        %1372 = vmatpush1.bf16.msra.mxu0 %v715
        %1373 = vmatprep.subr.bf16.mxu0 %v714
        %1374 = vmatpush1.bf16.msra.mxu0 %v713
        %1375 = vmatprep.subr.bf16.mxu0 %v744
        %1376 = vmatpush2.bf16.msra.mxu0 %v743
        %1377 = vmatprep.subr.bf16.mxu0 %v742
        %1378 = vmatpush2.bf16.msra.mxu0 %v741
        %1379 = vmatprep.subr.bf16.mxu0 %v740
        %1380 = vmatpush2.bf16.msra.mxu0 %v739
        %1381 = vmatprep.subr.bf16.mxu0 %v738
        %1382 = vmatpush2.bf16.msra.mxu0 %v737
        %1383 = vmatprep.subr.bf16.mxu0 %v736
        %1384 = vmatpush2.bf16.msra.mxu0 %v735
        %1385 = vmatprep.subr.bf16.mxu0 %v734
        %1386 = vmatpush2.bf16.msra.mxu0 %v733
        %1387 = vmatprep.subr.bf16.mxu0 %v732
        %1388 = vmatpush2.bf16.msra.mxu0 %v731
        %1389 = vmatprep.subr.bf16.mxu0 %v730
        %1390 = vmatpush2.bf16.msra.mxu0 %v729
        %1391 = vmatprep.mubr.bf16.mxu0 %v1257
        %1392 = vmatmul.mubr.bf16.gmra.mxu0 %v1256
        %v1393 = vpop.f32.mrf.mxu0
        %v1394 = vadd.f32 %v1321, %v1393
        %v1395 = vpop.f32.mrf.mxu0
        %v1396 = vadd.f32 %v1323, %v1395
        %v1397 = vpop.f32.mrf.mxu0
        %v1398 = vadd.f32 %v1325, %v1397
        %v1399 = vpop.f32.mrf.mxu0
        %v1400 = vadd.f32 %v1327, %v1399
        %1401 = vmatprep.mubr.bf16.mxu0 %v1261
        %1402 = vmatmul.mubr.bf16.gmra.mxu0 %v1260
        %v1403 = vpop.f32.mrf.mxu0
        %v1404 = vadd.f32 %v1331, %v1403
        %v1405 = vpop.f32.mrf.mxu0
        %v1406 = vadd.f32 %v1333, %v1405
        %v1407 = vpop.f32.mrf.mxu0
        %v1408 = vadd.f32 %v1335, %v1407
        %v1409 = vpop.f32.mrf.mxu0
        %v1410 = vadd.f32 %v1337, %v1409
        %1411 = vmatprep.mubr.bf16.mxu0 %v1265
        %1412 = vmatmul.mubr.bf16.gmra.mxu0 %v1264
        %v1413 = vpop.f32.mrf.mxu0
        %v1414 = vadd.f32 %v1341, %v1413
        %v1415 = vpop.f32.mrf.mxu0
        %v1416 = vadd.f32 %v1343, %v1415
        %v1417 = vpop.f32.mrf.mxu0
        %v1418 = vadd.f32 %v1345, %v1417
        %v1419 = vpop.f32.mrf.mxu0
        %v1420 = vadd.f32 %v1347, %v1419
        %1421 = vmatprep.mubr.bf16.mxu0 %v1269
        %1422 = vmatmul.mubr.bf16.gmra.mxu0 %v1268
        %v1423 = vpop.f32.mrf.mxu0
        %v1424 = vadd.f32 %v1351, %v1423
        %v1425 = vpop.f32.mrf.mxu0
        %v1426 = vadd.f32 %v1353, %v1425
        %v1427 = vpop.f32.mrf.mxu0
        %v1428 = vadd.f32 %v1355, %v1427
        %v1429 = vpop.f32.mrf.mxu0
        %v1430 = vadd.f32 %v1357, %v1429
        %1431 = vdwg.mxu0
        %v1432 = vadd.f32 %v1394, %v1398
        %v1433 = vadd.f32 %v1432, %v1404
        %v1434 = vadd.f32 %v1433, %v1408
        %v1435 = vadd.f32 %v1434, %v1414
        %v1436 = vadd.f32 %v1435, %v1418
        %v1437 = vadd.f32 %v1436, %v1424
        %v1438 = vadd.f32 %v1437, %v1428
        %v1439 = vrot.slane %v1438, 4
        %v1440 = vadd.f32 %v1438, %v1439
        %v1441 = vrot.slane %v1440, 2
        %v1442 = vadd.f32 %v1440, %v1441
        %v1443 = vrot.slane %v1442, 1
        %v1444 = vadd.f32 %v1442, %v1443
        %v1445 = vadd.f32 %v1396, %v1400
        %v1446 = vadd.f32 %v1445, %v1406
        %v1447 = vadd.f32 %v1446, %v1410
        %v1448 = vadd.f32 %v1447, %v1416
        %v1449 = vadd.f32 %v1448, %v1420
        %v1450 = vadd.f32 %v1449, %v1426
        %v1451 = vadd.f32 %v1450, %v1430
        %v1452 = vrot.slane %v1451, 4
        %v1453 = vadd.f32 %v1451, %v1452
        %v1454 = vrot.slane %v1453, 2
        %v1455 = vadd.f32 %v1453, %v1454
        %v1456 = vrot.slane %v1455, 1
        %v1457 = vadd.f32 %v1455, %v1456
        %v1458 = vmul.f32 %v1444, %v981
        %v1459 = vmul.f32 %v1457, %v981
        %v1460 = vsub.f32 %v1394, %v1458
        %v1461 = vsub.f32 %v1396, %v1459
        %v1462 = vsub.f32 %v1398, %v1458
        %v1463 = vsub.f32 %v1400, %v1459
        %v1464 = vsub.f32 %v1404, %v1458
        %v1465 = vsub.f32 %v1406, %v1459
        %v1466 = vsub.f32 %v1408, %v1458
        %v1467 = vsub.f32 %v1410, %v1459
        %v1468 = vsub.f32 %v1414, %v1458
        %v1469 = vsub.f32 %v1416, %v1459
        %v1470 = vsub.f32 %v1418, %v1458
        %v1471 = vsub.f32 %v1420, %v1459
        %v1472 = vsub.f32 %v1424, %v1458
        %v1473 = vsub.f32 %v1426, %v1459
        %v1474 = vsub.f32 %v1428, %v1458
        %v1475 = vsub.f32 %v1430, %v1459
        %v1476 = vmul.f32 %v1460, %v1460
        %v1477 = vmul.f32 %v1461, %v1461
        %v1478 = vmul.f32 %v1462, %v1462
        %v1479 = vmul.f32 %v1463, %v1463
        %v1480 = vmul.f32 %v1464, %v1464
        %v1481 = vmul.f32 %v1465, %v1465
        %v1482 = vmul.f32 %v1466, %v1466
        %v1483 = vmul.f32 %v1467, %v1467
        %v1484 = vmul.f32 %v1468, %v1468
        %v1485 = vmul.f32 %v1469, %v1469
        %v1486 = vmul.f32 %v1470, %v1470
        %v1487 = vmul.f32 %v1471, %v1471
        %v1488 = vmul.f32 %v1472, %v1472
        %v1489 = vmul.f32 %v1473, %v1473
        %v1490 = vmul.f32 %v1474, %v1474
        %v1491 = vmul.f32 %v1475, %v1475
        %v1492 = vadd.f32 %v1476, %v1478
        %v1493 = vadd.f32 %v1492, %v1480
        %v1494 = vadd.f32 %v1493, %v1482
        %v1495 = vadd.f32 %v1494, %v1484
        %v1496 = vadd.f32 %v1495, %v1486
        %v1497 = vadd.f32 %v1496, %v1488
        %v1498 = vadd.f32 %v1497, %v1490
        %v1499 = vrot.slane %v1498, 4
        %v1500 = vadd.f32 %v1498, %v1499
        %v1501 = vrot.slane %v1500, 2
        %v1502 = vadd.f32 %v1500, %v1501
        %v1503 = vrot.slane %v1502, 1
        %v1504 = vadd.f32 %v1502, %v1503
        %v1505 = vadd.f32 %v1477, %v1479
        %v1506 = vadd.f32 %v1505, %v1481
        %v1507 = vadd.f32 %v1506, %v1483
        %v1508 = vadd.f32 %v1507, %v1485
        %v1509 = vadd.f32 %v1508, %v1487
        %v1510 = vadd.f32 %v1509, %v1489
        %v1511 = vadd.f32 %v1510, %v1491
        %v1512 = vrot.slane %v1511, 4
        %v1513 = vadd.f32 %v1511, %v1512
        %v1514 = vrot.slane %v1513, 2
        %v1515 = vadd.f32 %v1513, %v1514
        %v1516 = vrot.slane %v1515, 1
        %v1517 = vadd.f32 %v1515, %v1516
        %v1518 = vmul.f32 %v1504, %v981
        %v1519 = vmul.f32 %v1517, %v981
        %v1520 = vadd.f32 %v1518, 1e-05
        %v1521 = vadd.f32 %v1519, 1e-05
        %v1522 = vrsqrt.pop %v1520
        %v1523 = vrsqrt.pop %v1521
        %v1524 = vmul.f32 %v1460, %v1522
        %v1525 = vmul.f32 %v1461, %v1523
        %v1526 = vmul.f32 %v1462, %v1522
        %v1527 = vmul.f32 %v1463, %v1523
        %v1528 = vmul.f32 %v1464, %v1522
        %v1529 = vmul.f32 %v1465, %v1523
        %v1530 = vmul.f32 %v1466, %v1522
        %v1531 = vmul.f32 %v1467, %v1523
        %v1532 = vmul.f32 %v1468, %v1522
        %v1533 = vmul.f32 %v1469, %v1523
        %v1534 = vmul.f32 %v1470, %v1522
        %v1535 = vmul.f32 %v1471, %v1523
        %v1536 = vmul.f32 %v1472, %v1522
        %v1537 = vmul.f32 %v1473, %v1523
        %v1538 = vmul.f32 %v1474, %v1522
        %v1539 = vmul.f32 %v1475, %v1523
        %v1540 = vmul.f32 %v1524, %v1068
        %v1541 = vmul.f32 %v1525, %v1072
        %v1542 = vmul.f32 %v1526, %v1068
        %v1543 = vmul.f32 %v1527, %v1072
        %v1544 = vmul.f32 %v1528, %v1068
        %v1545 = vmul.f32 %v1529, %v1072
        %v1546 = vmul.f32 %v1530, %v1068
        %v1547 = vmul.f32 %v1531, %v1072
        %v1548 = vmul.f32 %v1532, %v1068
        %v1549 = vmul.f32 %v1533, %v1072
        %v1550 = vmul.f32 %v1534, %v1068
        %v1551 = vmul.f32 %v1535, %v1072
        %v1552 = vmul.f32 %v1536, %v1068
        %v1553 = vmul.f32 %v1537, %v1072
        %v1554 = vmul.f32 %v1538, %v1068
        %v1555 = vmul.f32 %v1539, %v1072
        %v1556 = vadd.f32 %v1540, %v1095
        %v1557 = vadd.f32 %v1541, %v1099
        %v1558 = vadd.f32 %v1542, %v1095
        %v1559 = vadd.f32 %v1543, %v1099
        %v1560 = vadd.f32 %v1544, %v1095
        %v1561 = vadd.f32 %v1545, %v1099
        %v1562 = vadd.f32 %v1546, %v1095
        %v1563 = vadd.f32 %v1547, %v1099
        %v1564 = vadd.f32 %v1548, %v1095
        %v1565 = vadd.f32 %v1549, %v1099
        %v1566 = vadd.f32 %v1550, %v1095
        %v1567 = vadd.f32 %v1551, %v1099
        %v1568 = vadd.f32 %v1552, %v1095
        %v1569 = vadd.f32 %v1553, %v1099
        %v1570 = vadd.f32 %v1554, %v1095
        %v1571 = vadd.f32 %v1555, %v1099
        %v1572 = vmax.f32 %v1556, 0.0
        %v1573 = vmax.f32 %v1557, 0.0
        %v1574 = vmax.f32 %v1558, 0.0
        %v1575 = vmax.f32 %v1559, 0.0
        %v1576 = vmax.f32 %v1560, 0.0
        %v1577 = vmax.f32 %v1561, 0.0
        %v1578 = vmax.f32 %v1562, 0.0
        %v1579 = vmax.f32 %v1563, 0.0
        %v1580 = vmax.f32 %v1564, 0.0
        %v1581 = vmax.f32 %v1565, 0.0
        %v1582 = vmax.f32 %v1566, 0.0
        %v1583 = vmax.f32 %v1567, 0.0
        %v1584 = vmax.f32 %v1568, 0.0
        %v1585 = vmax.f32 %v1569, 0.0
        %v1586 = vmax.f32 %v1570, 0.0
        %v1587 = vmax.f32 %v1571, 0.0
        %v1588 = vpack.c.bf16 %v1574, %v1572
        %v1589 = vpack.c.bf16 %v1575, %v1573
        %v1590 = vpack.c.bf16 %v1578, %v1576
        %v1591 = vpack.c.bf16 %v1579, %v1577
        %v1592 = vpack.c.bf16 %v1582, %v1580
        %v1593 = vpack.c.bf16 %v1583, %v1581
        %v1594 = vpack.c.bf16 %v1586, %v1584
        %v1595 = vpack.c.bf16 %v1587, %v1585
        %v1604 = vunpack.c.l.b16 %v1588
        %v1605 = vunpack.c.l.b16 %v1589
        %v1606 = vunpack.c.h.b16 %v1588
        %v1607 = vunpack.c.h.b16 %v1589
        %v1608 = vunpack.c.l.b16 %v1590
        %v1609 = vunpack.c.l.b16 %v1591
        %v1610 = vunpack.c.h.b16 %v1590
        %v1611 = vunpack.c.h.b16 %v1591
        %v1612 = vunpack.c.l.b16 %v1592
        %v1613 = vunpack.c.l.b16 %v1593
        %v1614 = vunpack.c.h.b16 %v1592
        %v1615 = vunpack.c.h.b16 %v1593
        %v1616 = vunpack.c.l.b16 %v1594
        %v1617 = vunpack.c.l.b16 %v1595
        %v1618 = vunpack.c.h.b16 %v1594
        %v1619 = vunpack.c.h.b16 %v1595
        %v1620 = vpack.c.b16 %v1605, %v1604
        %v1621 = vpack.c.b16 %v1607, %v1606
        %v1622 = vpack.c.b16 %v1609, %v1608
        %v1623 = vpack.c.b16 %v1611, %v1610
        %v1624 = vpack.c.b16 %v1613, %v1612
        %v1625 = vpack.c.b16 %v1615, %v1614
        %v1626 = vpack.c.b16 %v1617, %v1616
        %v1627 = vpack.c.b16 %v1619, %v1618
        %1636 = vst [vmem:[%s318 + $0x40] sm:$0xff] %v1620
        %1637 = vst [vmem:[%s318 + $0x48] sm:$0xff] %v1621
        %1638 = vst [vmem:[%s318 + $0x50] sm:$0xff] %v1622
        %1639 = vst [vmem:[%s318 + $0x58] sm:$0xff] %v1623
        %1640 = vst [vmem:[%s318 + $0x60] sm:$0xff] %v1624
        %1641 = vst [vmem:[%s318 + $0x68] sm:$0xff] %v1625
        %1642 = vst [vmem:[%s318 + $0x70] sm:$0xff] %v1626
        %1643 = vst [vmem:[%s318 + $0x78] sm:$0xff] %v1627
        %s1644 = sand.u32 %s149, 1
        %s1645 = scalar_lea.sflag [#allocation4], %s1644
        %s1646 = sand.u32 %s149, 1
        %s1647 = smul.addr %s1646, 128
        %s1648 = scalar_lea.vmem [#allocation9], %s1647
        // Predicated region
        $region57: #{tpu_custom_call.1} parent=39 // pred_check
          %p1649 = pneg %p159
        $region58: #{tpu_custom_call.1} parent=39 // pred_check_branch
          %1651 = sbr.rel (%p1649) target = $region60
        $region59: #{tpu_custom_call.1} parent=39 // pred_region
          %s1652 = smul.u32 2, %s21
          %s1654 = ssub.s32 2048, 2048
          %1655 = vsyncadd %s1645, %s1654
          %s1656 = smul.addr %s1652, 64
          %s1657 = scalar_lea.hbm %s5, %s1656
          %s1658 = sshll.u32 %s1648, 4
          %s1659 = int_to_ptr.vmem [resolvable:$true] %s1658
          %1664 = dma.vmem_to_hbm [thread:$0]  %s1659, 2048, %s1657, %s1645, 128, 256, 8
        $region60: #{tpu_custom_call.1} parent=39 // pred_fallthru
          _
      $region40: #{tpu_custom_call.1} parent=5 // pred_fallthru
        _
      %p1665 = scmp.le.s32.totalorder 2, %s16
      // Predicated region
      $region61: #{tpu_custom_call.1} parent=5 // pred_check
        %p1666 = pneg %p1665
      $region62: #{tpu_custom_call.1} parent=5 // pred_check_branch
        %1668 = sbr.rel (%p1666) target = $region64
      $region63: #{tpu_custom_call.1} parent=5 // pred_region
        %s1669 = ssub.s32 %s16, 2
        // Predicated region
        $region65: #{tpu_custom_call.1} parent=63 // pred_check
          %p1670 = pneg %p165
        $region66: #{tpu_custom_call.1} parent=63 // pred_check_branch
          %1672 = sbr.rel (%p1670) target = $region68
        $region67: #{tpu_custom_call.1} parent=63 // pred_region
          %s1673 = sand.u32 %s150, 1
          %s1674 = scalar_lea.sflag [#allocation4], %s1673
          %s1675 = sand.u32 %s150, 1
          %s1676 = smul.addr %s1675, 128
          %s1677 = scalar_lea.vmem [#allocation9], %s1676
          %1678 = dma.done %s1674, 2048
        $region68: #{tpu_custom_call.1} parent=63 // pred_fallthru
          _
      $region64: #{tpu_custom_call.1} parent=5 // pred_fallthru
        _
    $region6: #{tpu_custom_call.1} parent=1 // loop_footer
      %s20 = sadd.s32 1, %s16
    $region7: #{tpu_custom_call.1} parent=1 // loop_footer_branch
      %15 = sbr.rel target = $region3
    $region8: #{tpu_custom_call.1} parent=1 // loop_exit
      _
    %1679 = vsyncpa [#allocation3], 1
    %s1680 = scalar_lea.sflag [#allocation3], 1
    %1681 = vsyncpa %s1680, 1
    %1682 = vsyncpa [#allocation6], 1
    %1683 = vsyncpa [#allocation4], 1
    %s1684 = scalar_lea.sflag [#allocation4], 1
    %1685 = vsyncpa %s1684, 1

</llo_original>
